<compile_context>
chip_gen: v7x
topology: tpu7x:2x2x1
jax: 0.10.0
libtpu: 0.0.40
codegen_flags: <defaults>
</compile_context>

<pallas_src>
import functools
import math

import jax
import jax.numpy as jnp
from jax import lax
from jax.experimental import pallas as pl
from jax.experimental.pallas import tpu as pltpu

LN_EPS = 1e-5


def _layernorm(x, g, b):
    # One-pass statistics: var = E[x^2] - E[x]^2 (torch LayerNorm: biased var).
    mu = jnp.mean(x, axis=-1, keepdims=True)
    ms = jnp.mean(x * x, axis=-1, keepdims=True)
    var = jnp.maximum(ms - mu * mu, 0.0)
    return (x - mu) * lax.rsqrt(var + LN_EPS) * g + b


def _erf(x, *, exact):
    # Abramowitz & Stegun 7.1.26 rational approximation, |err| < 1.5e-7.
    # TODO(synk): replace with lax.erf if/when Mosaic exposes a native erf.
    a1, a2, a3, a4, a5 = 0.254829592, -0.284496736, 1.421413741, -1.453152027, 1.061405429
    p = 0.3275911
    s = jnp.where(x >= 0.0, 1.0, -1.0)
    ax = jnp.abs(x)
    denom = 1.0 + p * ax
    # Perf path routes the divide to the EUP slot (otherwise idle here).
    t = (1.0 / denom) if exact else pl.reciprocal(denom, approx=True)
    poly = ((((a5 * t + a4) * t + a3) * t + a2) * t + a1) * t
    return s * (1.0 - poly * jnp.exp(-ax * ax))


def _gelu_exact(x, *, exact):
    # torch.nn.GELU() default = exact erf-based GELU.
    return x * 0.5 * (1.0 + _erf(x * (1.0 / math.sqrt(2.0)), exact=exact))


def transformer_layer_kernel(
    x_ref, ln1_g_ref, ln1_b_ref, w_qkv_ref, w_out_ref, b_out_ref,
    ln2_g_ref, ln2_b_ref, w1_ref, b1_ref, w2_ref, b2_ref, o_ref,
    *, heads, dim_head, exact,
):
    bb, n, d = x_ref.shape
    inner = heads * dim_head
    scale = dim_head ** (-0.5)
    mxu_dt = w_qkv_ref.dtype          # bf16 on the perf path, f32 on the exact path
    r = bb * n

    # Fold the batch block into the sublane dim: all LN / matmul / GELU math runs
    # on a lane/sublane-dense (bb*n, d) 2-D slab.
    x2 = x_ref[...].reshape(r, d).astype(jnp.float32)

    # ---------------- Attention ----------------
    xn = _layernorm(x2, ln1_g_ref[...], ln1_b_ref[...])
    # ONE wide (r, d) @ (d, 3*inner) MXU matmul produces Q, K and V together.
    qkv = jnp.dot(xn.astype(mxu_dt), w_qkv_ref[...],
                  preferred_element_type=jnp.float32)            # (r, 3*inner) f32

    def to_heads(t):
        # (r, inner) -> (bb*heads, n, dim_head): one reshape + one transpose
        # (replaces the previous O(heads) slice+stack relayout).
        t = t.reshape(bb, n, heads, dim_head)
        t = jnp.transpose(t, (0, 2, 1, 3))                       # (bb, heads, n, dh)
        return t.reshape(bb * heads, n, dim_head)

    # Static split at offsets 0 / inner / 2*inner; scale q once (r*inner mults).
    q = to_heads(qkv[:, :inner] * scale).astype(mxu_dt)
    k = to_heads(qkv[:, inner:2 * inner]).astype(mxu_dt)
    v = to_heads(qkv[:, 2 * inner:]).astype(mxu_dt)

    # Head-batched q·kᵀ and p·v: single batched MXU ops, no per-head loop.
    # Leading batch = (bb, heads) folded, so tokens never mix across batch.
    dots = jnp.einsum("gqd,gkd->gqk", q, k,
                      preferred_element_type=jnp.float32)        # (g, n, n) f32
    m = jnp.max(dots, axis=-1, keepdims=True)
    e = jnp.exp(dots - m)
    s = jnp.sum(e, axis=-1, keepdims=True)
    p = (e / s) if exact else e * pl.reciprocal(s, approx=True)
    o_h = jnp.einsum("gqk,gkd->gqd", p.astype(mxu_dt), v,
                     preferred_element_type=jnp.float32)         # (g, n, dh)

    # Merge heads back onto the lane dim (inverse reshape+transpose) and do ONE
    # (r, inner) @ (inner, d) output projection.
    o_cat = jnp.transpose(o_h.reshape(bb, heads, n, dim_head),
                          (0, 2, 1, 3)).reshape(r, inner)
    y = jnp.dot(o_cat.astype(mxu_dt), w_out_ref[...],
                preferred_element_type=jnp.float32) + b_out_ref[...]   # (r, d)
    # (module has NO residual connection)

    # ---------------- FeedForward ----------------
    # TODO(synk): tile over the mlp dim at production shapes so h1 is never
    # fully resident.
    yn = _layernorm(y, ln2_g_ref[...], ln2_b_ref[...])
    h1 = jnp.dot(yn.astype(mxu_dt), w1_ref[...],
                 preferred_element_type=jnp.float32) + b1_ref[...]
    h1 = _gelu_exact(h1, exact=exact)
    z = jnp.dot(h1.astype(mxu_dt), w2_ref[...],
                preferred_element_type=jnp.float32) + b2_ref[...]

    o_ref[...] = z.reshape(bb, n, d).astype(o_ref.dtype)


# -------------------- sizing helpers --------------------
def _tpu_vmem_capacity_bytes():
    try:
        return int(pltpu.get_tpu_info().vmem_capacity_bytes)
    except Exception:
        return 128 * 1024 * 1024


def _scoped_vmem_limit(capacity_bytes):
    # v7x: 64 MiB VMEM per TensorCore -> cap scoped limit at ~40 MiB.
    # v5e / v6e: 128 MiB physical -> raise toward ~100 MiB.
    if capacity_bytes <= 64 * 1024 * 1024:
        return 40 * 1024 * 1024
    return 100 * 1024 * 1024


def _pick_batch_block(B, N, D, inner, mlp, heads, w_itemsize, vmem_limit,
                      target_rows=512):
    """Largest batch block whose (bb*N) row slab keeps all in-kernel
    intermediates inside the VMEM budget and stays MXU-friendly
    (<= ~512 rows; on v5e 128-multiples suffice, on v6e/v7x aim for 256)."""
    weight_b = ((D * 3 * inner + inner * D + D * mlp + mlp * D) * w_itemsize
                + (6 * D + mlp) * 4)                     # single-buffered weights
    budget = vmem_limit - weight_b - 2 * 1024 * 1024     # compiler-scratch headroom

    def live_bytes(bb):
        r = bb * N
        io = 2 * 2 * bb * N * D * 4                      # double-buffered x / out
        qkv = r * 3 * inner * 4                          # qkv f32
        att = 2 * heads * bb * N * N * 4 + 3 * r * inner * 2   # dots+exp, q/k/v
        ffn = r * mlp * 4                                # h1 f32
        acts = 3 * r * D * 4                             # xn / y / yn f32
        return io + qkv + att + ffn + acts

    best = 1
    for bb in range(1, B + 1):
        if B % bb:
            continue
        if bb * N <= target_rows and live_bytes(bb) <= budget:
            best = bb
    # v7x megacore: prefer >= 2 equally-sized "parallel" steps when that does
    # not shrink the MXU M-dim below 256 rows.
    if B // best == 1 and best > 1 and B % (best // 2) == 0 and (best // 2) * N >= 256:
        best //= 2
    return best


# -------------------- wrappers --------------------
def prepare_params(layers, mxu_dtype=jnp.bfloat16):
    """Cast MXU weight operands ONCE at setup (not per forward call under jit).
    LN params and biases stay fp32 (added to fp32 accumulators / VPU math)."""
    out = []
    for p in layers:
        q = dict(p)
        for name in ("w_qkv", "w_out", "w1", "w2"):
            q[name] = p[name].astype(mxu_dtype)
        out.append(q)
    return out


def transformer_layer(x, p, *, heads, dim_head, batch_block=None):
    B, N, D = x.shape
    inner = heads * dim_head
    mlp = p["w1"].shape[1]
    w_itemsize = jnp.dtype(p["w_qkv"].dtype).itemsize
    exact = bool(p["w_qkv"].dtype == jnp.float32)

    vmem_limit = _scoped_vmem_limit(_tpu_vmem_capacity_bytes())
    bb = (_pick_batch_block(B, N, D, inner, mlp, heads, w_itemsize, vmem_limit)
          if batch_block is None else batch_block)
    assert B % bb == 0

    def full(shape):
        # Grid-invariant operand: same block every step -> single-buffer it.
        return pl.BlockSpec(shape, lambda b: (0,) * len(shape),
                            pipeline_mode=pl.Buffered(1))

    kernel = functools.partial(transformer_layer_kernel, heads=heads,
                               dim_head=dim_head, exact=exact)
    return pl.pallas_call(
        kernel,
        out_shape=jax.ShapeDtypeStruct((B, N, D), x.dtype),
        grid=(B // bb,),
        in_specs=[
            pl.BlockSpec((bb, N, D), lambda b: (b, 0, 0)),   # x
            full((1, D)), full((1, D)),                      # ln1 gamma/beta
            full((D, 3 * inner)),                            # to_qkv weight
            full((inner, D)), full((1, D)),                  # to_out weight / bias
            full((1, D)), full((1, D)),                      # ln2 gamma/beta
            full((D, mlp)), full((1, mlp)),                  # ff linear1 w / b
            full((mlp, D)), full((1, D)),                    # ff linear2 w / b
        ],
        out_specs=pl.BlockSpec((bb, N, D), lambda b: (b, 0, 0)),
        compiler_params=pltpu.CompilerParams(
            dimension_semantics=("parallel",),
            vmem_limit_bytes=vmem_limit,
        ),
    )(x, p["ln1_g"], p["ln1_b"], p["w_qkv"], p["w_out"], p["b_out"],
      p["ln2_g"], p["ln2_b"], p["w1"], p["b1"], p["w2"], p["b2"])


def transformer_forward(x, layers, *, heads, dim_head, batch_block=None):
    # TODO(synk): cross-pallas_call weight prefetch (start layer L+1's weight
    # DMA from layer L, return DMA sem + VMEM ref) to hide the per-layer fetch.
    for p in layers:
        x = transformer_layer(x, p, heads=heads, dim_head=dim_head,
                              batch_block=batch_block)
    return x


# -------------------- pure-JAX reference (for verification) --------------------
def _ref_layer(x, p, heads, dim_head):
    inner = heads * dim_head
    scale = dim_head ** (-0.5)

    def ln(t, g, b):
        mu = jnp.mean(t, -1, keepdims=True)
        var = jnp.mean((t - mu) ** 2, -1, keepdims=True)
        return (t - mu) / jnp.sqrt(var + LN_EPS) * g + b

    B, N, D = x.shape
    xn = ln(x, p["ln1_g"], p["ln1_b"])
    qkv = xn @ p["w_qkv"]
    q, k, v = jnp.split(qkv, 3, axis=-1)
    reshape = lambda t: t.reshape(B, N, heads, dim_head).transpose(0, 2, 1, 3)
    q, k, v = reshape(q), reshape(k), reshape(v)
    dots = jnp.einsum("bhnd,bhmd->bhnm", q, k) * scale
    attn = jax.nn.softmax(dots, axis=-1)
    out = jnp.einsum("bhnm,bhmd->bhnd", attn, v)
    out = out.transpose(0, 2, 1, 3).reshape(B, N, inner)
    y = out @ p["w_out"] + p["b_out"]
    yn = ln(y, p["ln2_g"], p["ln2_b"])
    h1 = jax.nn.gelu(yn @ p["w1"] + p["b1"], approximate=False)
    return h1 @ p["w2"] + p["b2"]


def _make_layer_params(key, dim, heads, dim_head, mlp_dim):
    inner = heads * dim_head
    ks = jax.random.split(key, 6)
    init = lambda k, shape, fan_in: jax.random.normal(k, shape, jnp.float32) / jnp.sqrt(fan_in)
    return dict(
        ln1_g=jnp.ones((1, dim), jnp.float32),
        ln1_b=jnp.zeros((1, dim), jnp.float32),
        w_qkv=init(ks[0], (dim, 3 * inner), dim),
        w_out=init(ks[1], (inner, dim), inner),
        b_out=0.02 * jax.random.normal(ks[2], (1, dim), jnp.float32),
        ln2_g=jnp.ones((1, dim), jnp.float32),
        ln2_b=jnp.zeros((1, dim), jnp.float32),
        w1=init(ks[3], (dim, mlp_dim), dim),
        b1=0.02 * jax.random.normal(ks[4], (1, mlp_dim), jnp.float32),
        w2=init(ks[5], (mlp_dim, dim), mlp_dim),
        b2=jnp.zeros((1, dim), jnp.float32),
    )


if __name__ == "__main__":
    # Small shapes: dim=32, depth=2, heads=4, dim_head=16, mlp_dim=64; batch=2, seq=8.
    B, N, D = 2, 8, 32
    depth, heads, dim_head, mlp_dim = 2, 4, 16, 64

    root = jax.random.PRNGKey(0)
    x_key, *layer_keys = jax.random.split(root, depth + 1)
    x = jax.random.normal(x_key, (B, N, D), jnp.float32)
    layers_f32 = [_make_layer_params(k, D, heads, dim_head, mlp_dim) for k in layer_keys]

    # pure-JAX fp32 reference
    ref = x
    for p in layers_f32:
        ref = _ref_layer(ref, p, heads, dim_head)

    # 1) exact-numerics path: fp32 MXU operands, exact divides; batch_block=1
    #    gives a 2-step "parallel" grid (exercises pipelining / index maps).
    out_f32 = transformer_forward(x, layers_f32, heads=heads, dim_head=dim_head,
                                  batch_block=1)
    out_f32 = jax.block_until_ready(out_f32)
    assert out_f32.shape == (B, N, D)
    assert jnp.allclose(out_f32, ref, rtol=2e-3, atol=2e-3), "fp32 path mismatch vs reference"

    # 2) perf path: bf16 MXU operands cast ONCE at setup, auto batch block,
    #    approx (EUP) reciprocals; fp32 accumulation / fp32 VPU math.
    layers_bf16 = prepare_params(layers_f32, jnp.bfloat16)
    out_bf16 = transformer_forward(x, layers_bf16, heads=heads, dim_head=dim_head)
    out_bf16 = jax.block_until_ready(out_bf16)
    assert out_bf16.shape == (B, N, D)
    assert jnp.allclose(out_bf16, ref, rtol=1e-1, atol=1e-1), "bf16 path mismatch vs reference"

    print("KERNEL_OK")
</pallas_src>

<mosaic_0001>
module attributes {stable_mosaic.version = 11 : i64} {
  func.func @transformer_layer_kernel(%arg0: i32, %arg1: memref<1x8x32xf32, #tpu.memory_space<vmem>>, %arg2: memref<1x32xf32, #tpu.memory_space<vmem>>, %arg3: memref<1x32xf32, #tpu.memory_space<vmem>>, %arg4: memref<32x192xf32, #tpu.memory_space<vmem>>, %arg5: memref<64x32xf32, #tpu.memory_space<vmem>>, %arg6: memref<1x32xf32, #tpu.memory_space<vmem>>, %arg7: memref<1x32xf32, #tpu.memory_space<vmem>>, %arg8: memref<1x32xf32, #tpu.memory_space<vmem>>, %arg9: memref<32x64xf32, #tpu.memory_space<vmem>>, %arg10: memref<1x64xf32, #tpu.memory_space<vmem>>, %arg11: memref<64x32xf32, #tpu.memory_space<vmem>>, %arg12: memref<1x32xf32, #tpu.memory_space<vmem>>, %arg13: memref<1x8x32xf32, #tpu.memory_space<vmem>>) attributes {dimension_semantics = [#tpu.dimension_semantics<parallel>], iteration_bounds = array<i64: 2>, scalar_prefetch = 0 : i64, scratch_operands = 0 : i64, tpu.core_type = #tpu.core_type<tc>, window_params = [{transform_indices = @transform_0, window_bounds = array<i64: 1, 8, 32>}, {pipeline_mode = #tpu.pipeline_mode<synchronous>, transform_indices = @transform_1, window_bounds = array<i64: 1, 32>}, {pipeline_mode = #tpu.pipeline_mode<synchronous>, transform_indices = @transform_2, window_bounds = array<i64: 1, 32>}, {pipeline_mode = #tpu.pipeline_mode<synchronous>, transform_indices = @transform_3, window_bounds = array<i64: 32, 192>}, {pipeline_mode = #tpu.pipeline_mode<synchronous>, transform_indices = @transform_4, window_bounds = array<i64: 64, 32>}, {pipeline_mode = #tpu.pipeline_mode<synchronous>, transform_indices = @transform_5, window_bounds = array<i64: 1, 32>}, {pipeline_mode = #tpu.pipeline_mode<synchronous>, transform_indices = @transform_6, window_bounds = array<i64: 1, 32>}, {pipeline_mode = #tpu.pipeline_mode<synchronous>, transform_indices = @transform_7, window_bounds = array<i64: 1, 32>}, {pipeline_mode = #tpu.pipeline_mode<synchronous>, transform_indices = @transform_8, window_bounds = array<i64: 32, 64>}, {pipeline_mode = #tpu.pipeline_mode<synchronous>, transform_indices = @transform_9, window_bounds = array<i64: 1, 64>}, {pipeline_mode = #tpu.pipeline_mode<synchronous>, transform_indices = @transform_10, window_bounds = array<i64: 64, 32>}, {pipeline_mode = #tpu.pipeline_mode<synchronous>, transform_indices = @transform_11, window_bounds = array<i64: 1, 32>}, {transform_indices = @transform_12, window_bounds = array<i64: 1, 8, 32>}]} {
    %c0 = arith.constant 0 : index
    %c0_0 = arith.constant 0 : index
    %c0_1 = arith.constant 0 : index
    %0 = vector.load %arg1[%c0, %c0_0, %c0_1] : memref<1x8x32xf32, #tpu.memory_space<vmem>>, vector<1x8x32xf32>
    %1 = vector.shape_cast %0 : vector<1x8x32xf32> to vector<8x32xf32>
    %c0_2 = arith.constant 0 : index
    %c0_3 = arith.constant 0 : index
    %2 = vector.load %arg2[%c0_2, %c0_3] : memref<1x32xf32, #tpu.memory_space<vmem>>, vector<1x32xf32>
    %c0_4 = arith.constant 0 : index
    %c0_5 = arith.constant 0 : index
    %3 = vector.load %arg3[%c0_4, %c0_5] : memref<1x32xf32, #tpu.memory_space<vmem>>, vector<1x32xf32>
    %cst = arith.constant dense<0.000000e+00> : vector<8xf32>
    %4 = vector.multi_reduction <add>, %1, %cst [1] : vector<8x32xf32> to vector<8xf32>
    %5 = vector.shape_cast %4 : vector<8xf32> to vector<8x1xf32>
    %cst_6 = arith.constant 3.200000e+01 : f32
    %6 = vector.broadcast %cst_6 : f32 to vector<8x1xf32>
    %7 = arith.divf %5, %6 : vector<8x1xf32>
    %8 = arith.mulf %1, %1 : vector<8x32xf32>
    %cst_7 = arith.constant dense<0.000000e+00> : vector<8xf32>
    %9 = vector.multi_reduction <add>, %8, %cst_7 [1] : vector<8x32xf32> to vector<8xf32>
    %10 = vector.shape_cast %9 : vector<8xf32> to vector<8x1xf32>
    %cst_8 = arith.constant 3.200000e+01 : f32
    %11 = vector.broadcast %cst_8 : f32 to vector<8x1xf32>
    %12 = arith.divf %10, %11 : vector<8x1xf32>
    %13 = arith.mulf %7, %7 : vector<8x1xf32>
    %14 = arith.subf %12, %13 : vector<8x1xf32>
    %cst_9 = arith.constant 0.000000e+00 : f32
    %15 = vector.broadcast %cst_9 : f32 to vector<8x1xf32>
    %16 = arith.maximumf %14, %15 : vector<8x1xf32>
    %17 = vector.broadcast %7 : vector<8x1xf32> to vector<8x32xf32>
    %18 = arith.subf %1, %17 : vector<8x32xf32>
    %cst_10 = arith.constant 9.99999974E-6 : f32
    %19 = vector.broadcast %cst_10 : f32 to vector<8x1xf32>
    %20 = arith.addf %16, %19 : vector<8x1xf32>
    %21 = math.rsqrt %20 : vector<8x1xf32>
    %22 = vector.broadcast %21 : vector<8x1xf32> to vector<8x32xf32>
    %23 = arith.mulf %18, %22 : vector<8x32xf32>
    %24 = vector.broadcast %2 : vector<1x32xf32> to vector<8x32xf32>
    %25 = arith.mulf %23, %24 : vector<8x32xf32>
    %26 = vector.broadcast %3 : vector<1x32xf32> to vector<8x32xf32>
    %27 = arith.addf %25, %26 : vector<8x32xf32>
    %c0_11 = arith.constant 0 : index
    %c0_12 = arith.constant 0 : index
    %28 = vector.load %arg4[%c0_11, %c0_12] : memref<32x192xf32, #tpu.memory_space<vmem>>, vector<32x192xf32>
    %cst_13 = arith.constant dense<0.000000e+00> : vector<8x192xf32>
    %29 = tpu.matmul %27, %28, %cst_13 {dimension_numbers = #tpu.dot_dimension_numbers<[1], [0], [0], [1], [0, 0, 1, 1], [], []>} : vector<8x32xf32>, vector<32x192xf32>, vector<8x192xf32> -> vector<8x192xf32>
    %30 = vector.extract_strided_slice %29 {offsets = [0, 0], sizes = [8, 64], strides = [1, 1]} : vector<8x192xf32> to vector<8x64xf32>
    %cst_14 = arith.constant 2.500000e-01 : f32
    %31 = vector.broadcast %cst_14 : f32 to vector<8x64xf32>
    %32 = arith.mulf %30, %31 : vector<8x64xf32>
    %33 = vector.shape_cast %32 : vector<8x64xf32> to vector<1x8x4x16xf32>
    %34 = tpu.transpose %33, [0, 2, 1, 3] : vector<1x8x4x16xf32> -> vector<1x4x8x16xf32>
    %35 = vector.shape_cast %34 : vector<1x4x8x16xf32> to vector<4x8x16xf32>
    %36 = vector.extract_strided_slice %29 {offsets = [0, 64], sizes = [8, 64], strides = [1, 1]} : vector<8x192xf32> to vector<8x64xf32>
    %37 = vector.shape_cast %36 : vector<8x64xf32> to vector<1x8x4x16xf32>
    %38 = tpu.transpose %37, [0, 2, 1, 3] : vector<1x8x4x16xf32> -> vector<1x4x8x16xf32>
    %39 = vector.shape_cast %38 : vector<1x4x8x16xf32> to vector<4x8x16xf32>
    %40 = vector.extract_strided_slice %29 {offsets = [0, 128], sizes = [8, 64], strides = [1, 1]} : vector<8x192xf32> to vector<8x64xf32>
    %41 = vector.shape_cast %40 : vector<8x64xf32> to vector<1x8x4x16xf32>
    %42 = tpu.transpose %41, [0, 2, 1, 3] : vector<1x8x4x16xf32> -> vector<1x4x8x16xf32>
    %43 = vector.shape_cast %42 : vector<1x4x8x16xf32> to vector<4x8x16xf32>
    "tpu.trace_start"() <{level = 10 : i32, message = "gqd,gkd->gqk"}> : () -> ()
    %cst_15 = arith.constant dense<0.000000e+00> : vector<4x8x8xf32>
    %44 = tpu.matmul %35, %39, %cst_15 {dimension_numbers = #tpu.dot_dimension_numbers<[2], [2], [1], [1], [0, 0, 0, 1, 1, 1], [0], [0]>} : vector<4x8x16xf32>, vector<4x8x16xf32>, vector<4x8x8xf32> -> vector<4x8x8xf32>
    "tpu.trace_stop"() : () -> ()
    %cst_16 = arith.constant dense<0xFF800000> : vector<4x8xf32>
    %45 = vector.multi_reduction <maximumf>, %44, %cst_16 [2] : vector<4x8x8xf32> to vector<4x8xf32>
    %46 = vector.shape_cast %45 : vector<4x8xf32> to vector<4x8x1xf32>
    %47 = vector.broadcast %46 : vector<4x8x1xf32> to vector<4x8x8xf32>
    %48 = arith.subf %44, %47 : vector<4x8x8xf32>
    %49 = math.exp %48 : vector<4x8x8xf32>
    %cst_17 = arith.constant dense<0.000000e+00> : vector<4x8xf32>
    %50 = vector.multi_reduction <add>, %49, %cst_17 [2] : vector<4x8x8xf32> to vector<4x8xf32>
    %51 = vector.shape_cast %50 : vector<4x8xf32> to vector<4x8x1xf32>
    %52 = vector.broadcast %51 : vector<4x8x1xf32> to vector<4x8x8xf32>
    %53 = arith.divf %49, %52 : vector<4x8x8xf32>
    "tpu.trace_start"() <{level = 10 : i32, message = "gqk,gkd->gqd"}> : () -> ()
    %cst_18 = arith.constant dense<0.000000e+00> : vector<4x8x16xf32>
    %54 = tpu.matmul %53, %43, %cst_18 {dimension_numbers = #tpu.dot_dimension_numbers<[2], [1], [1], [2], [0, 0, 0, 1, 1, 2], [0], [0]>} : vector<4x8x8xf32>, vector<4x8x16xf32>, vector<4x8x16xf32> -> vector<4x8x16xf32>
    "tpu.trace_stop"() : () -> ()
    %55 = vector.shape_cast %54 : vector<4x8x16xf32> to vector<1x4x8x16xf32>
    %56 = tpu.transpose %55, [0, 2, 1, 3] : vector<1x4x8x16xf32> -> vector<1x8x4x16xf32>
    %57 = vector.shape_cast %56 : vector<1x8x4x16xf32> to vector<8x64xf32>
    %c0_19 = arith.constant 0 : index
    %c0_20 = arith.constant 0 : index
    %58 = vector.load %arg5[%c0_19, %c0_20] : memref<64x32xf32, #tpu.memory_space<vmem>>, vector<64x32xf32>
    %cst_21 = arith.constant dense<0.000000e+00> : vector<8x32xf32>
    %59 = tpu.matmul %57, %58, %cst_21 {dimension_numbers = #tpu.dot_dimension_numbers<[1], [0], [0], [1], [0, 0, 1, 1], [], []>} : vector<8x64xf32>, vector<64x32xf32>, vector<8x32xf32> -> vector<8x32xf32>
    %c0_22 = arith.constant 0 : index
    %c0_23 = arith.constant 0 : index
    %60 = vector.load %arg6[%c0_22, %c0_23] : memref<1x32xf32, #tpu.memory_space<vmem>>, vector<1x32xf32>
    %61 = vector.broadcast %60 : vector<1x32xf32> to vector<8x32xf32>
    %62 = arith.addf %59, %61 : vector<8x32xf32>
    %c0_24 = arith.constant 0 : index
    %c0_25 = arith.constant 0 : index
    %63 = vector.load %arg7[%c0_24, %c0_25] : memref<1x32xf32, #tpu.memory_space<vmem>>, vector<1x32xf32>
    %c0_26 = arith.constant 0 : index
    %c0_27 = arith.constant 0 : index
    %64 = vector.load %arg8[%c0_26, %c0_27] : memref<1x32xf32, #tpu.memory_space<vmem>>, vector<1x32xf32>
    %cst_28 = arith.constant dense<0.000000e+00> : vector<8xf32>
    %65 = vector.multi_reduction <add>, %62, %cst_28 [1] : vector<8x32xf32> to vector<8xf32>
    %66 = vector.shape_cast %65 : vector<8xf32> to vector<8x1xf32>
    %cst_29 = arith.constant 3.200000e+01 : f32
    %67 = vector.broadcast %cst_29 : f32 to vector<8x1xf32>
    %68 = arith.divf %66, %67 : vector<8x1xf32>
    %69 = arith.mulf %62, %62 : vector<8x32xf32>
    %cst_30 = arith.constant dense<0.000000e+00> : vector<8xf32>
    %70 = vector.multi_reduction <add>, %69, %cst_30 [1] : vector<8x32xf32> to vector<8xf32>
    %71 = vector.shape_cast %70 : vector<8xf32> to vector<8x1xf32>
    %cst_31 = arith.constant 3.200000e+01 : f32
    %72 = vector.broadcast %cst_31 : f32 to vector<8x1xf32>
    %73 = arith.divf %71, %72 : vector<8x1xf32>
    %74 = arith.mulf %68, %68 : vector<8x1xf32>
    %75 = arith.subf %73, %74 : vector<8x1xf32>
    %cst_32 = arith.constant 0.000000e+00 : f32
    %76 = vector.broadcast %cst_32 : f32 to vector<8x1xf32>
    %77 = arith.maximumf %75, %76 : vector<8x1xf32>
    %78 = vector.broadcast %68 : vector<8x1xf32> to vector<8x32xf32>
    %79 = arith.subf %62, %78 : vector<8x32xf32>
    %cst_33 = arith.constant 9.99999974E-6 : f32
    %80 = vector.broadcast %cst_33 : f32 to vector<8x1xf32>
    %81 = arith.addf %77, %80 : vector<8x1xf32>
    %82 = math.rsqrt %81 : vector<8x1xf32>
    %83 = vector.broadcast %82 : vector<8x1xf32> to vector<8x32xf32>
    %84 = arith.mulf %79, %83 : vector<8x32xf32>
    %85 = vector.broadcast %63 : vector<1x32xf32> to vector<8x32xf32>
    %86 = arith.mulf %84, %85 : vector<8x32xf32>
    %87 = vector.broadcast %64 : vector<1x32xf32> to vector<8x32xf32>
    %88 = arith.addf %86, %87 : vector<8x32xf32>
    %c0_34 = arith.constant 0 : index
    %c0_35 = arith.constant 0 : index
    %89 = vector.load %arg9[%c0_34, %c0_35] : memref<32x64xf32, #tpu.memory_space<vmem>>, vector<32x64xf32>
    %cst_36 = arith.constant dense<0.000000e+00> : vector<8x64xf32>
    %90 = tpu.matmul %88, %89, %cst_36 {dimension_numbers = #tpu.dot_dimension_numbers<[1], [0], [0], [1], [0, 0, 1, 1], [], []>} : vector<8x32xf32>, vector<32x64xf32>, vector<8x64xf32> -> vector<8x64xf32>
    %c0_37 = arith.constant 0 : index
    %c0_38 = arith.constant 0 : index
    %91 = vector.load %arg10[%c0_37, %c0_38] : memref<1x64xf32, #tpu.memory_space<vmem>>, vector<1x64xf32>
    %92 = vector.broadcast %91 : vector<1x64xf32> to vector<8x64xf32>
    %93 = arith.addf %90, %92 : vector<8x64xf32>
    %cst_39 = arith.constant 5.000000e-01 : f32
    %94 = vector.broadcast %cst_39 : f32 to vector<8x64xf32>
    %95 = arith.mulf %93, %94 : vector<8x64xf32>
    %cst_40 = arith.constant 0.707106769 : f32
    %96 = vector.broadcast %cst_40 : f32 to vector<8x64xf32>
    %97 = arith.mulf %93, %96 : vector<8x64xf32>
    %cst_41 = arith.constant 0.000000e+00 : f32
    %98 = vector.broadcast %cst_41 : f32 to vector<8x64xf32>
    %99 = arith.cmpf oge, %97, %98 : vector<8x64xf32>
    %cst_42 = arith.constant 1.000000e+00 : f32
    %cst_43 = arith.constant -1.000000e+00 : f32
    %100 = vector.broadcast %cst_42 : f32 to vector<8x64xf32>
    %101 = vector.broadcast %cst_43 : f32 to vector<8x64xf32>
    %102 = arith.select %99, %100, %101 : vector<8x64xi1>, vector<8x64xf32>
    %103 = math.absf %97 : vector<8x64xf32>
    %cst_44 = arith.constant 0.327591091 : f32
    %104 = vector.broadcast %cst_44 : f32 to vector<8x64xf32>
    %105 = arith.mulf %104, %103 : vector<8x64xf32>
    %cst_45 = arith.constant 1.000000e+00 : f32
    %106 = vector.broadcast %cst_45 : f32 to vector<8x64xf32>
    %107 = arith.addf %106, %105 : vector<8x64xf32>
    %cst_46 = arith.constant 1.000000e+00 : f32
    %108 = vector.broadcast %cst_46 : f32 to vector<8x64xf32>
    %109 = arith.divf %108, %107 : vector<8x64xf32>
    %cst_47 = arith.constant 1.06140542 : f32
    %110 = vector.broadcast %cst_47 : f32 to vector<8x64xf32>
    %111 = arith.mulf %110, %109 : vector<8x64xf32>
    %cst_48 = arith.constant -1.45315206 : f32
    %112 = vector.broadcast %cst_48 : f32 to vector<8x64xf32>
    %113 = arith.addf %111, %112 : vector<8x64xf32>
    %114 = arith.mulf %113, %109 : vector<8x64xf32>
    %cst_49 = arith.constant 1.42141378 : f32
    %115 = vector.broadcast %cst_49 : f32 to vector<8x64xf32>
    %116 = arith.addf %114, %115 : vector<8x64xf32>
    %117 = arith.mulf %116, %109 : vector<8x64xf32>
    %cst_50 = arith.constant -0.284496725 : f32
    %118 = vector.broadcast %cst_50 : f32 to vector<8x64xf32>
    %119 = arith.addf %117, %118 : vector<8x64xf32>
    %120 = arith.mulf %119, %109 : vector<8x64xf32>
    %cst_51 = arith.constant 0.254829586 : f32
    %121 = vector.broadcast %cst_51 : f32 to vector<8x64xf32>
    %122 = arith.addf %120, %121 : vector<8x64xf32>
    %123 = arith.mulf %122, %109 : vector<8x64xf32>
    %cst_52 = arith.constant 0.000000e+00 : f32
    %124 = vector.broadcast %cst_52 : f32 to vector<8x64xf32>
    %125 = arith.subf %124, %103 : vector<8x64xf32>
    %126 = arith.mulf %125, %103 : vector<8x64xf32>
    %127 = math.exp %126 : vector<8x64xf32>
    %128 = arith.mulf %123, %127 : vector<8x64xf32>
    %cst_53 = arith.constant 1.000000e+00 : f32
    %129 = vector.broadcast %cst_53 : f32 to vector<8x64xf32>
    %130 = arith.subf %129, %128 : vector<8x64xf32>
    %131 = arith.mulf %102, %130 : vector<8x64xf32>
    %cst_54 = arith.constant 1.000000e+00 : f32
    %132 = vector.broadcast %cst_54 : f32 to vector<8x64xf32>
    %133 = arith.addf %132, %131 : vector<8x64xf32>
    %134 = arith.mulf %95, %133 : vector<8x64xf32>
    %c0_55 = arith.constant 0 : index
    %c0_56 = arith.constant 0 : index
    %135 = vector.load %arg11[%c0_55, %c0_56] : memref<64x32xf32, #tpu.memory_space<vmem>>, vector<64x32xf32>
    %cst_57 = arith.constant dense<0.000000e+00> : vector<8x32xf32>
    %136 = tpu.matmul %134, %135, %cst_57 {dimension_numbers = #tpu.dot_dimension_numbers<[1], [0], [0], [1], [0, 0, 1, 1], [], []>} : vector<8x64xf32>, vector<64x32xf32>, vector<8x32xf32> -> vector<8x32xf32>
    %c0_58 = arith.constant 0 : index
    %c0_59 = arith.constant 0 : index
    %137 = vector.load %arg12[%c0_58, %c0_59] : memref<1x32xf32, #tpu.memory_space<vmem>>, vector<1x32xf32>
    %138 = vector.broadcast %137 : vector<1x32xf32> to vector<8x32xf32>
    %139 = arith.addf %136, %138 : vector<8x32xf32>
    %140 = vector.shape_cast %139 : vector<8x32xf32> to vector<1x8x32xf32>
    %c0_60 = arith.constant 0 : index
    %c0_61 = arith.constant 0 : index
    %c0_62 = arith.constant 0 : index
    %141 = vector.load %arg13[%c0_60, %c0_61, %c0_62] : memref<1x8x32xf32, #tpu.memory_space<vmem>>, vector<1x8x32xf32>
    tpu.vector_store %arg13[%c0_60, %c0_61, %c0_62], %140 {strides = array<i32>} : memref<1x8x32xf32, #tpu.memory_space<vmem>>, vector<1x8x32xf32>,
    return
  }
  func.func @transform_0(%arg0: i32) -> (i32, i32, i32) {
    %c0_i32 = arith.constant 0 : i32
    %c0_i32_0 = arith.constant 0 : i32
    %c0_i32_1 = arith.constant 0 : i32
    return %arg0, %c0_i32, %c0_i32_0 : i32, i32, i32
  }
  func.func @transform_1(%arg0: i32) -> (i32, i32) {
    %c0_i32 = arith.constant 0 : i32
    %c0_i32_0 = arith.constant 0 : i32
    %c0_i32_1 = arith.constant 0 : i32
    return %c0_i32, %c0_i32_0 : i32, i32
  }
  func.func @transform_2(%arg0: i32) -> (i32, i32) {
    %c0_i32 = arith.constant 0 : i32
    %c0_i32_0 = arith.constant 0 : i32
    %c0_i32_1 = arith.constant 0 : i32
    return %c0_i32, %c0_i32_0 : i32, i32
  }
  func.func @transform_3(%arg0: i32) -> (i32, i32) {
    %c0_i32 = arith.constant 0 : i32
    %c0_i32_0 = arith.constant 0 : i32
    %c0_i32_1 = arith.constant 0 : i32
    return %c0_i32, %c0_i32_0 : i32, i32
  }
  func.func @transform_4(%arg0: i32) -> (i32, i32) {
    %c0_i32 = arith.constant 0 : i32
    %c0_i32_0 = arith.constant 0 : i32
    %c0_i32_1 = arith.constant 0 : i32
    return %c0_i32, %c0_i32_0 : i32, i32
  }
  func.func @transform_5(%arg0: i32) -> (i32, i32) {
    %c0_i32 = arith.constant 0 : i32
    %c0_i32_0 = arith.constant 0 : i32
    %c0_i32_1 = arith.constant 0 : i32
    return %c0_i32, %c0_i32_0 : i32, i32
  }
  func.func @transform_6(%arg0: i32) -> (i32, i32) {
    %c0_i32 = arith.constant 0 : i32
    %c0_i32_0 = arith.constant 0 : i32
    %c0_i32_1 = arith.constant 0 : i32
    return %c0_i32, %c0_i32_0 : i32, i32
  }
  func.func @transform_7(%arg0: i32) -> (i32, i32) {
    %c0_i32 = arith.constant 0 : i32
    %c0_i32_0 = arith.constant 0 : i32
    %c0_i32_1 = arith.constant 0 : i32
    return %c0_i32, %c0_i32_0 : i32, i32
  }
  func.func @transform_8(%arg0: i32) -> (i32, i32) {
    %c0_i32 = arith.constant 0 : i32
    %c0_i32_0 = arith.constant 0 : i32
    %c0_i32_1 = arith.constant 0 : i32
    return %c0_i32, %c0_i32_0 : i32, i32
  }
  func.func @transform_9(%arg0: i32) -> (i32, i32) {
    %c0_i32 = arith.constant 0 : i32
    %c0_i32_0 = arith.constant 0 : i32
    %c0_i32_1 = arith.constant 0 : i32
    return %c0_i32, %c0_i32_0 : i32, i32
  }
  func.func @transform_10(%arg0: i32) -> (i32, i32) {
    %c0_i32 = arith.constant 0 : i32
    %c0_i32_0 = arith.constant 0 : i32
    %c0_i32_1 = arith.constant 0 : i32
    return %c0_i32, %c0_i32_0 : i32, i32
  }
  func.func @transform_11(%arg0: i32) -> (i32, i32) {
    %c0_i32 = arith.constant 0 : i32
    %c0_i32_0 = arith.constant 0 : i32
    %c0_i32_1 = arith.constant 0 : i32
    return %c0_i32, %c0_i32_0 : i32, i32
  }
  func.func @transform_12(%arg0: i32) -> (i32, i32, i32) {
    %c0_i32 = arith.constant 0 : i32
    %c0_i32_0 = arith.constant 0 : i32
    %c0_i32_1 = arith.constant 0 : i32
    return %arg0, %c0_i32, %c0_i32_0 : i32, i32, i32
  }
}

</mosaic_0001>

<llo_original>
// kernel: tpu_custom_call.1
$region0: #{tpu_custom_call.1}
  #allocation0 [shape = 'u32[]', space=smem, size = 0x4, offset = 0x4, fixed_abs, tag = 'smem constant byte address 0x4 - core index']
  #allocation1 [shape = 'u32[144,128]{1,0:T(1,128)}', space=vmem, size = 0x12000, scoped, tag = 'internal scratch']
  %s0 = inlined_call_operand.hbm [shape: f32[2,8,32], index: 0, kind: input, shape index: {}]
  %s1 = inlined_call_operand.hbm [shape: f32[1,32], index: 1, kind: input, shape index: {}]
  %s2 = inlined_call_operand.hbm [shape: f32[1,32], index: 2, kind: input, shape index: {}]
  %s3 = inlined_call_operand.hbm [shape: f32[32,192], index: 3, kind: input, shape index: {}]
  %s4 = inlined_call_operand.hbm [shape: f32[64,32], index: 4, kind: input, shape index: {}]
  %s5 = inlined_call_operand.hbm [shape: f32[1,32], index: 5, kind: input, shape index: {}]
  %s6 = inlined_call_operand.hbm [shape: f32[1,32], index: 6, kind: input, shape index: {}]
  %s7 = inlined_call_operand.hbm [shape: f32[1,32], index: 7, kind: input, shape index: {}]
  %s8 = inlined_call_operand.hbm [shape: f32[32,64], index: 8, kind: input, shape index: {}]
  %s9 = inlined_call_operand.hbm [shape: f32[1,64], index: 9, kind: input, shape index: {}]
  %s10 = inlined_call_operand.hbm [shape: f32[64,32], index: 10, kind: input, shape index: {}]
  %s11 = inlined_call_operand.hbm [shape: f32[1,32], index: 11, kind: input, shape index: {}]
  %s12 = inlined_call_operand.hbm [shape: f32[2,8,32], index: 12, kind: output, shape index: {}]
  %s13 = sld [smem:[#allocation0]]
  $region129: #{tpu_custom_call.1} parent=0
    _
  %s15 = ssub.s32 1, %s13
  %s16 = scalar_select 0, %s15, %s13
  $region1: #{tpu_custom_call.1} parent=0
    #allocation2 [shape = 'u8[8192]{0}', space=vmem, size = 0x2000, scoped, tag = 'input window, operand 0']
    #allocation3 [shape = 's32[2]{0}', space=sflag, size = 0x8, scoped, tag = 'scoped memory for tpu_custom_call.1']
    #allocation4 [shape = 's32[2]{0}', space=sflag, size = 0x8, scoped, tag = 'scoped memory for tpu_custom_call.1']
    #allocation5 [shape = 'u8[512]{0}', space=vmem, size = 0x400, scoped, tag = 'input window, operand 1, single buffered']
    #allocation6 [shape = 's32[1]{0}', space=sflag, size = 0x4, scoped, tag = 'scoped memory for tpu_custom_call.1']
    #allocation7 [shape = 'u8[512]{0}', space=vmem, size = 0x400, scoped, tag = 'input window, operand 2, single buffered']
    #allocation8 [shape = 'u8[32768]{0}', space=vmem, size = 0x8000, scoped, tag = 'input window, operand 3, single buffered']
    #allocation9 [shape = 's32[1]{0}', space=sflag, size = 0x4, scoped, tag = 'scoped memory for tpu_custom_call.1']
    #allocation10 [shape = 'u8[32768]{0}', space=vmem, size = 0x8000, scoped, tag = 'input window, operand 4, single buffered']
    #allocation11 [shape = 'u8[512]{0}', space=vmem, size = 0x400, scoped, tag = 'input window, operand 5, single buffered']
    #allocation12 [shape = 's32[1]{0}', space=sflag, size = 0x4, scoped, tag = 'scoped memory for tpu_custom_call.1']
    #allocation13 [shape = 'u8[512]{0}', space=vmem, size = 0x400, scoped, tag = 'input window, operand 6, single buffered']
    #allocation14 [shape = 'u8[512]{0}', space=vmem, size = 0x400, scoped, tag = 'input window, operand 7, single buffered']
    #allocation15 [shape = 's32[1]{0}', space=sflag, size = 0x4, scoped, tag = 'scoped memory for tpu_custom_call.1']
    #allocation16 [shape = 'u8[16384]{0}', space=vmem, size = 0x4000, scoped, tag = 'input window, operand 8, single buffered']
    #allocation17 [shape = 'u8[512]{0}', space=vmem, size = 0x400, scoped, tag = 'input window, operand 9, single buffered']
    #allocation18 [shape = 's32[1]{0}', space=sflag, size = 0x4, scoped, tag = 'scoped memory for tpu_custom_call.1']
    #allocation19 [shape = 'u8[32768]{0}', space=vmem, size = 0x8000, scoped, tag = 'input window, operand 10, single buffered']
    #allocation20 [shape = 'u8[512]{0}', space=vmem, size = 0x400, scoped, tag = 'input window, operand 11, single buffered']
    #allocation21 [shape = 's32[1]{0}', space=sflag, size = 0x4, scoped, tag = 'scoped memory for tpu_custom_call.1']
    #allocation22 [shape = 'u8[8192]{0}', space=vmem, size = 0x2000, scoped, tag = 'output window, operand 0']
    %17 = vsyncpa [#allocation3], 0
    %s18 = scalar_lea.sflag [#allocation3], 1
    %19 = vsyncpa %s18, 0
    %20 = vsyncpa [#allocation6], 0
    %21 = vsyncpa [#allocation9], 0
    %22 = vsyncpa [#allocation12], 0
    %23 = vsyncpa [#allocation15], 0
    %24 = vsyncpa [#allocation18], 0
    %25 = vsyncpa [#allocation21], 0
    %26 = vsyncpa [#allocation4], 0
    %s27 = scalar_lea.sflag [#allocation4], 1
    %28 = vsyncpa %s27, 0
    loop: start=0, step=1, limit=4
    $region2: #{tpu_custom_call.1} parent=1 // loop_pre_header
      _
    $region3: #{tpu_custom_call.1} parent=1 // loop_header
      %s30 = sphi 0, %s34
      %p31 = scmp.ge.s32.totalorder %s30, 4
      %s40 = sphi 0, %s42
      %s43 = sphi 0, %s40
      %s44 = sphi 0, %s43
      %s60 = sphi 0, %s44
      %s64 = sphi 0, %s64
      %s66 = sphi 0, %s64
      %s67 = sphi 0, %s66
      %s81 = sphi 0, %s67
      %s85 = sphi 0, %s85
      %s87 = sphi 0, %s85
      %s88 = sphi 0, %s87
      %s102 = sphi 0, %s88
      %s106 = sphi 0, %s106
      %s108 = sphi 0, %s106
      %s109 = sphi 0, %s108
      %s123 = sphi 0, %s109
      %s127 = sphi 0, %s127
      %s129 = sphi 0, %s127
      %s130 = sphi 0, %s129
      %s144 = sphi 0, %s130
      %s148 = sphi 0, %s148
      %s150 = sphi 0, %s148
      %s151 = sphi 0, %s150
      %s165 = sphi 0, %s151
      %s169 = sphi 0, %s169
      %s171 = sphi 0, %s169
      %s172 = sphi 0, %s171
      %s186 = sphi 0, %s172
      %s190 = sphi 0, %s190
      %s192 = sphi 0, %s190
      %s193 = sphi 0, %s192
      %s207 = sphi 0, %s193
      %s211 = sphi 0, %s211
      %s213 = sphi 0, %s211
      %s214 = sphi 0, %s213
      %s228 = sphi 0, %s214
      %s232 = sphi 0, %s232
      %s234 = sphi 0, %s232
      %s235 = sphi 0, %s234
      %s249 = sphi 0, %s235
      %s253 = sphi 0, %s253
      %s255 = sphi 0, %s253
      %s256 = sphi 0, %s255
      %s270 = sphi 0, %s256
      %s274 = sphi 0, %s274
      %s276 = sphi 0, %s274
      %s277 = sphi 0, %s276
      %s291 = sphi 0, %s277
      %s297 = sphi 0, %s299
      %s300 = sphi 0, %s297
      %s301 = sphi 0, %s300
      %s317 = sphi 0, %s301
    $region4: #{tpu_custom_call.1} parent=1 // loop_header_branch
      %33 = sbr.rel (%p31) target = $region8
    $region5: #{tpu_custom_call.1} parent=1 // loop_body
      %s35 = ssub.s32 %s30, 1
      %s36 = ssub.s32 %s30, 2
      %s37 = sadd.s32 %s30, 1
      %s38 = ssub.s32 %s30, %s37
      %p39 = scmp.eq.s32.totalorder %s38, 0
      %s41 = sadd.s32 %s40, 1
      %s42 = scalar_select %p39, %s40, %s41
      %p45 = pneg %p39
      %p46 = scmp.eq.s32.totalorder %s30, 1
      %p47 = por %p45, %p46
      %p48 = scmp.ne.s32.totalorder %s40, %s43
      %p49 = scmp.eq.s32.totalorder %s30, 0
      %p50 = por %p48, %p49
      %p51 = scmp.ne.s32.totalorder %s40, %s43
      %p52 = scmp.eq.s32.totalorder %s35, 1
      %p53 = por %p51, %p52
      %p54 = scmp.ne.s32.totalorder %s43, %s44
      %p55 = scmp.eq.s32.totalorder %s35, 0
      %p56 = por %p54, %p55
      %p57 = scmp.ne.s32.totalorder %s43, %s44
      %p58 = scmp.eq.s32.totalorder %s36, 1
      %p59 = por %p57, %p58
      %p61 = scmp.ne.s32.totalorder %s44, %s60
      %p62 = scmp.eq.s32.totalorder %s36, 0
      %p63 = por %p61, %p62
      %s65 = sadd.s32 %s64, 1
      %p68 = scmp.eq.s32.totalorder %s30, 1
      %p69 = scmp.ne.s32.totalorder %s64, %s66
      %p70 = scmp.eq.s32.totalorder %s30, 0
      %p71 = por %p69, %p70
      %p72 = scmp.ne.s32.totalorder %s64, %s66
      %p73 = scmp.eq.s32.totalorder %s35, 1
      %p74 = por %p72, %p73
      %p75 = scmp.ne.s32.totalorder %s66, %s67
      %p76 = scmp.eq.s32.totalorder %s35, 0
      %p77 = por %p75, %p76
      %p78 = scmp.ne.s32.totalorder %s66, %s67
      %p79 = scmp.eq.s32.totalorder %s36, 1
      %p80 = por %p78, %p79
      %p82 = scmp.ne.s32.totalorder %s67, %s81
      %p83 = scmp.eq.s32.totalorder %s36, 0
      %p84 = por %p82, %p83
      %s86 = sadd.s32 %s85, 1
      %p89 = scmp.eq.s32.totalorder %s30, 1
      %p90 = scmp.ne.s32.totalorder %s85, %s87
      %p91 = scmp.eq.s32.totalorder %s30, 0
      %p92 = por %p90, %p91
      %p93 = scmp.ne.s32.totalorder %s85, %s87
      %p94 = scmp.eq.s32.totalorder %s35, 1
      %p95 = por %p93, %p94
      %p96 = scmp.ne.s32.totalorder %s87, %s88
      %p97 = scmp.eq.s32.totalorder %s35, 0
      %p98 = por %p96, %p97
      %p99 = scmp.ne.s32.totalorder %s87, %s88
      %p100 = scmp.eq.s32.totalorder %s36, 1
      %p101 = por %p99, %p100
      %p103 = scmp.ne.s32.totalorder %s88, %s102
      %p104 = scmp.eq.s32.totalorder %s36, 0
      %p105 = por %p103, %p104
      %s107 = sadd.s32 %s106, 1
      %p110 = scmp.eq.s32.totalorder %s30, 1
      %p111 = scmp.ne.s32.totalorder %s106, %s108
      %p112 = scmp.eq.s32.totalorder %s30, 0
      %p113 = por %p111, %p112
      %p114 = scmp.ne.s32.totalorder %s106, %s108
      %p115 = scmp.eq.s32.totalorder %s35, 1
      %p116 = por %p114, %p115
      %p117 = scmp.ne.s32.totalorder %s108, %s109
      %p118 = scmp.eq.s32.totalorder %s35, 0
      %p119 = por %p117, %p118
      %p120 = scmp.ne.s32.totalorder %s108, %s109
      %p121 = scmp.eq.s32.totalorder %s36, 1
      %p122 = por %p120, %p121
      %p124 = scmp.ne.s32.totalorder %s109, %s123
      %p125 = scmp.eq.s32.totalorder %s36, 0
      %p126 = por %p124, %p125
      %s128 = sadd.s32 %s127, 1
      %p131 = scmp.eq.s32.totalorder %s30, 1
      %p132 = scmp.ne.s32.totalorder %s127, %s129
      %p133 = scmp.eq.s32.totalorder %s30, 0
      %p134 = por %p132, %p133
      %p135 = scmp.ne.s32.totalorder %s127, %s129
      %p136 = scmp.eq.s32.totalorder %s35, 1
      %p137 = por %p135, %p136
      %p138 = scmp.ne.s32.totalorder %s129, %s130
      %p139 = scmp.eq.s32.totalorder %s35, 0
      %p140 = por %p138, %p139
      %p141 = scmp.ne.s32.totalorder %s129, %s130
      %p142 = scmp.eq.s32.totalorder %s36, 1
      %p143 = por %p141, %p142
      %p145 = scmp.ne.s32.totalorder %s130, %s144
      %p146 = scmp.eq.s32.totalorder %s36, 0
      %p147 = por %p145, %p146
      %s149 = sadd.s32 %s148, 1
      %p152 = scmp.eq.s32.totalorder %s30, 1
      %p153 = scmp.ne.s32.totalorder %s148, %s150
      %p154 = scmp.eq.s32.totalorder %s30, 0
      %p155 = por %p153, %p154
      %p156 = scmp.ne.s32.totalorder %s148, %s150
      %p157 = scmp.eq.s32.totalorder %s35, 1
      %p158 = por %p156, %p157
      %p159 = scmp.ne.s32.totalorder %s150, %s151
      %p160 = scmp.eq.s32.totalorder %s35, 0
      %p161 = por %p159, %p160
      %p162 = scmp.ne.s32.totalorder %s150, %s151
      %p163 = scmp.eq.s32.totalorder %s36, 1
      %p164 = por %p162, %p163
      %p166 = scmp.ne.s32.totalorder %s151, %s165
      %p167 = scmp.eq.s32.totalorder %s36, 0
      %p168 = por %p166, %p167
      %s170 = sadd.s32 %s169, 1
      %p173 = scmp.eq.s32.totalorder %s30, 1
      %p174 = scmp.ne.s32.totalorder %s169, %s171
      %p175 = scmp.eq.s32.totalorder %s30, 0
      %p176 = por %p174, %p175
      %p177 = scmp.ne.s32.totalorder %s169, %s171
      %p178 = scmp.eq.s32.totalorder %s35, 1
      %p179 = por %p177, %p178
      %p180 = scmp.ne.s32.totalorder %s171, %s172
      %p181 = scmp.eq.s32.totalorder %s35, 0
      %p182 = por %p180, %p181
      %p183 = scmp.ne.s32.totalorder %s171, %s172
      %p184 = scmp.eq.s32.totalorder %s36, 1
      %p185 = por %p183, %p184
      %p187 = scmp.ne.s32.totalorder %s172, %s186
      %p188 = scmp.eq.s32.totalorder %s36, 0
      %p189 = por %p187, %p188
      %s191 = sadd.s32 %s190, 1
      %p194 = scmp.eq.s32.totalorder %s30, 1
      %p195 = scmp.ne.s32.totalorder %s190, %s192
      %p196 = scmp.eq.s32.totalorder %s30, 0
      %p197 = por %p195, %p196
      %p198 = scmp.ne.s32.totalorder %s190, %s192
      %p199 = scmp.eq.s32.totalorder %s35, 1
      %p200 = por %p198, %p199
      %p201 = scmp.ne.s32.totalorder %s192, %s193
      %p202 = scmp.eq.s32.totalorder %s35, 0
      %p203 = por %p201, %p202
      %p204 = scmp.ne.s32.totalorder %s192, %s193
      %p205 = scmp.eq.s32.totalorder %s36, 1
      %p206 = por %p204, %p205
      %p208 = scmp.ne.s32.totalorder %s193, %s207
      %p209 = scmp.eq.s32.totalorder %s36, 0
      %p210 = por %p208, %p209
      %s212 = sadd.s32 %s211, 1
      %p215 = scmp.eq.s32.totalorder %s30, 1
      %p216 = scmp.ne.s32.totalorder %s211, %s213
      %p217 = scmp.eq.s32.totalorder %s30, 0
      %p218 = por %p216, %p217
      %p219 = scmp.ne.s32.totalorder %s211, %s213
      %p220 = scmp.eq.s32.totalorder %s35, 1
      %p221 = por %p219, %p220
      %p222 = scmp.ne.s32.totalorder %s213, %s214
      %p223 = scmp.eq.s32.totalorder %s35, 0
      %p224 = por %p222, %p223
      %p225 = scmp.ne.s32.totalorder %s213, %s214
      %p226 = scmp.eq.s32.totalorder %s36, 1
      %p227 = por %p225, %p226
      %p229 = scmp.ne.s32.totalorder %s214, %s228
      %p230 = scmp.eq.s32.totalorder %s36, 0
      %p231 = por %p229, %p230
      %s233 = sadd.s32 %s232, 1
      %p236 = scmp.eq.s32.totalorder %s30, 1
      %p237 = scmp.ne.s32.totalorder %s232, %s234
      %p238 = scmp.eq.s32.totalorder %s30, 0
      %p239 = por %p237, %p238
      %p240 = scmp.ne.s32.totalorder %s232, %s234
      %p241 = scmp.eq.s32.totalorder %s35, 1
      %p242 = por %p240, %p241
      %p243 = scmp.ne.s32.totalorder %s234, %s235
      %p244 = scmp.eq.s32.totalorder %s35, 0
      %p245 = por %p243, %p244
      %p246 = scmp.ne.s32.totalorder %s234, %s235
      %p247 = scmp.eq.s32.totalorder %s36, 1
      %p248 = por %p246, %p247
      %p250 = scmp.ne.s32.totalorder %s235, %s249
      %p251 = scmp.eq.s32.totalorder %s36, 0
      %p252 = por %p250, %p251
      %s254 = sadd.s32 %s253, 1
      %p257 = scmp.eq.s32.totalorder %s30, 1
      %p258 = scmp.ne.s32.totalorder %s253, %s255
      %p259 = scmp.eq.s32.totalorder %s30, 0
      %p260 = por %p258, %p259
      %p261 = scmp.ne.s32.totalorder %s253, %s255
      %p262 = scmp.eq.s32.totalorder %s35, 1
      %p263 = por %p261, %p262
      %p264 = scmp.ne.s32.totalorder %s255, %s256
      %p265 = scmp.eq.s32.totalorder %s35, 0
      %p266 = por %p264, %p265
      %p267 = scmp.ne.s32.totalorder %s255, %s256
      %p268 = scmp.eq.s32.totalorder %s36, 1
      %p269 = por %p267, %p268
      %p271 = scmp.ne.s32.totalorder %s256, %s270
      %p272 = scmp.eq.s32.totalorder %s36, 0
      %p273 = por %p271, %p272
      %s275 = sadd.s32 %s274, 1
      %p278 = scmp.eq.s32.totalorder %s30, 1
      %p279 = scmp.ne.s32.totalorder %s274, %s276
      %p280 = scmp.eq.s32.totalorder %s30, 0
      %p281 = por %p279, %p280
      %p282 = scmp.ne.s32.totalorder %s274, %s276
      %p283 = scmp.eq.s32.totalorder %s35, 1
      %p284 = por %p282, %p283
      %p285 = scmp.ne.s32.totalorder %s276, %s277
      %p286 = scmp.eq.s32.totalorder %s35, 0
      %p287 = por %p285, %p286
      %p288 = scmp.ne.s32.totalorder %s276, %s277
      %p289 = scmp.eq.s32.totalorder %s36, 1
      %p290 = por %p288, %p289
      %p292 = scmp.ne.s32.totalorder %s277, %s291
      %p293 = scmp.eq.s32.totalorder %s36, 0
      %p294 = por %p292, %p293
      %s295 = ssub.s32 %s30, %s37
      %p296 = scmp.eq.s32.totalorder %s295, 0
      %s298 = sadd.s32 %s297, 1
      %s299 = scalar_select %p296, %s297, %s298
      %p302 = pneg %p296
      %p303 = scmp.eq.s32.totalorder %s30, 1
      %p304 = por %p302, %p303
      %p305 = scmp.ne.s32.totalorder %s297, %s300
      %p306 = scmp.eq.s32.totalorder %s30, 0
      %p307 = por %p305, %p306
      %p308 = scmp.ne.s32.totalorder %s297, %s300
      %p309 = scmp.eq.s32.totalorder %s35, 1
      %p310 = por %p308, %p309
      %p311 = scmp.ne.s32.totalorder %s300, %s301
      %p312 = scmp.eq.s32.totalorder %s35, 0
      %p313 = por %p311, %p312
      %p314 = scmp.ne.s32.totalorder %s300, %s301
      %p315 = scmp.eq.s32.totalorder %s36, 1
      %p316 = por %p314, %p315
      %p318 = scmp.ne.s32.totalorder %s301, %s317
      %p319 = scmp.eq.s32.totalorder %s36, 0
      %p320 = por %p318, %p319
      %p321 = scmp.le.s32.totalorder 1, %s30
      %p322 = scmp.lt.s32.totalorder %s30, 3
      %p323 = pnand %p321, %p322
      %p324 = pneg %p323
      // Predicated region
      $region9: #{tpu_custom_call.1} parent=5 // pred_check
        _
      $region10: #{tpu_custom_call.1} parent=5 // pred_check_branch
        %326 = sbr.rel (%p323) target = $region12
      $region11: #{tpu_custom_call.1} parent=5 // pred_region
        %s327 = ssub.s32 %s30, 1
        // Predicated region
        $region13: #{tpu_custom_call.1} parent=11 // pred_check
          %p328 = pneg %p77
        $region14: #{tpu_custom_call.1} parent=11 // pred_check_branch
          %330 = sbr.rel (%p328) target = $region16
        $region15: #{tpu_custom_call.1} parent=11 // pred_region
          %s332 = ssub.s32 16, 16
          %333 = vsyncadd [#allocation6], %s332
          %s335 = sshll.u32 [#allocation5], 4
          %s336 = int_to_ptr.vmem [resolvable:$true] %s335
          %338 = dma.hbm_to_vmem [thread:$0]  %s1, 16, %s336, [#allocation6]
        $region16: #{tpu_custom_call.1} parent=11 // pred_fallthru
          _
        // Predicated region
        $region17: #{tpu_custom_call.1} parent=11 // pred_check
          %p339 = pneg %p98
        $region18: #{tpu_custom_call.1} parent=11 // pred_check_branch
          %341 = sbr.rel (%p339) target = $region20
        $region19: #{tpu_custom_call.1} parent=11 // pred_region
          %s343 = ssub.s32 16, 16
          %344 = vsyncadd [#allocation6], %s343
          %s346 = sshll.u32 [#allocation7], 4
          %s347 = int_to_ptr.vmem [resolvable:$true] %s346
          %349 = dma.hbm_to_vmem [thread:$0]  %s2, 16, %s347, [#allocation6]
        $region20: #{tpu_custom_call.1} parent=11 // pred_fallthru
          _
        // Predicated region
        $region21: #{tpu_custom_call.1} parent=11 // pred_check
          %p350 = pneg %p119
        $region22: #{tpu_custom_call.1} parent=11 // pred_check_branch
          %352 = sbr.rel (%p350) target = $region24
        $region23: #{tpu_custom_call.1} parent=11 // pred_region
          %s354 = ssub.s32 1024, 1024
          %355 = vsyncadd [#allocation9], %s354
          %s356 = sshll.u32 [#allocation8], 4
          %s357 = int_to_ptr.vmem [resolvable:$true] %s356
          %362 = dma.hbm_to_vmem [thread:$0]  %s3, 1024, %s357, [#allocation9], 256, 256, 16
        $region24: #{tpu_custom_call.1} parent=11 // pred_fallthru
          _
        // Predicated region
        $region25: #{tpu_custom_call.1} parent=11 // pred_check
          %p363 = pneg %p140
        $region26: #{tpu_custom_call.1} parent=11 // pred_check_branch
          %365 = sbr.rel (%p363) target = $region28
        $region27: #{tpu_custom_call.1} parent=11 // pred_region
          %s367 = ssub.s32 1024, 1024
          %368 = vsyncadd [#allocation9], %s367
          %s369 = sshll.u32 [#allocation10], 4
          %s370 = int_to_ptr.vmem [resolvable:$true] %s369
          %375 = dma.hbm_to_vmem [thread:$0]  %s4, 1024, %s370, [#allocation9], 128, 128, 8
        $region28: #{tpu_custom_call.1} parent=11 // pred_fallthru
          _
        // Predicated region
        $region29: #{tpu_custom_call.1} parent=11 // pred_check
          %p376 = pneg %p161
        $region30: #{tpu_custom_call.1} parent=11 // pred_check_branch
          %378 = sbr.rel (%p376) target = $region32
        $region31: #{tpu_custom_call.1} parent=11 // pred_region
          %s380 = ssub.s32 16, 16
          %381 = vsyncadd [#allocation12], %s380
          %s383 = sshll.u32 [#allocation11], 4
          %s384 = int_to_ptr.vmem [resolvable:$true] %s383
          %386 = dma.hbm_to_vmem [thread:$0]  %s5, 16, %s384, [#allocation12]
        $region32: #{tpu_custom_call.1} parent=11 // pred_fallthru
          _
        // Predicated region
        $region33: #{tpu_custom_call.1} parent=11 // pred_check
          %p387 = pneg %p182
        $region34: #{tpu_custom_call.1} parent=11 // pred_check_branch
          %389 = sbr.rel (%p387) target = $region36
        $region35: #{tpu_custom_call.1} parent=11 // pred_region
          %s391 = ssub.s32 16, 16
          %392 = vsyncadd [#allocation12], %s391
          %s394 = sshll.u32 [#allocation13], 4
          %s395 = int_to_ptr.vmem [resolvable:$true] %s394
          %397 = dma.hbm_to_vmem [thread:$0]  %s6, 16, %s395, [#allocation12]
        $region36: #{tpu_custom_call.1} parent=11 // pred_fallthru
          _
        // Predicated region
        $region37: #{tpu_custom_call.1} parent=11 // pred_check
          %p398 = pneg %p203
        $region38: #{tpu_custom_call.1} parent=11 // pred_check_branch
          %400 = sbr.rel (%p398) target = $region40
        $region39: #{tpu_custom_call.1} parent=11 // pred_region
          %s402 = ssub.s32 16, 16
          %403 = vsyncadd [#allocation15], %s402
          %s405 = sshll.u32 [#allocation14], 4
          %s406 = int_to_ptr.vmem [resolvable:$true] %s405
          %408 = dma.hbm_to_vmem [thread:$0]  %s7, 16, %s406, [#allocation15]
        $region40: #{tpu_custom_call.1} parent=11 // pred_fallthru
          _
        // Predicated region
        $region41: #{tpu_custom_call.1} parent=11 // pred_check
          %p409 = pneg %p224
        $region42: #{tpu_custom_call.1} parent=11 // pred_check_branch
          %411 = sbr.rel (%p409) target = $region44
        $region43: #{tpu_custom_call.1} parent=11 // pred_region
          %s413 = ssub.s32 512, 512
          %414 = vsyncadd [#allocation15], %s413
          %s415 = sshll.u32 [#allocation16], 4
          %s416 = int_to_ptr.vmem [resolvable:$true] %s415
          %421 = dma.hbm_to_vmem [thread:$0]  %s8, 512, %s416, [#allocation15], 128, 128, 8
        $region44: #{tpu_custom_call.1} parent=11 // pred_fallthru
          _
        // Predicated region
        $region45: #{tpu_custom_call.1} parent=11 // pred_check
          %p422 = pneg %p245
        $region46: #{tpu_custom_call.1} parent=11 // pred_check_branch
          %424 = sbr.rel (%p422) target = $region48
        $region47: #{tpu_custom_call.1} parent=11 // pred_region
          %s426 = ssub.s32 16, 16
          %427 = vsyncadd [#allocation18], %s426
          %s429 = sshll.u32 [#allocation17], 4
          %s430 = int_to_ptr.vmem [resolvable:$true] %s429
          %432 = dma.hbm_to_vmem [thread:$0]  %s9, 16, %s430, [#allocation18]
        $region48: #{tpu_custom_call.1} parent=11 // pred_fallthru
          _
        // Predicated region
        $region49: #{tpu_custom_call.1} parent=11 // pred_check
          %p433 = pneg %p266
        $region50: #{tpu_custom_call.1} parent=11 // pred_check_branch
          %435 = sbr.rel (%p433) target = $region52
        $region51: #{tpu_custom_call.1} parent=11 // pred_region
          %s437 = ssub.s32 1024, 1024
          %438 = vsyncadd [#allocation18], %s437
          %s439 = sshll.u32 [#allocation19], 4
          %s440 = int_to_ptr.vmem [resolvable:$true] %s439
          %445 = dma.hbm_to_vmem [thread:$0]  %s10, 1024, %s440, [#allocation18], 128, 128, 8
        $region52: #{tpu_custom_call.1} parent=11 // pred_fallthru
          _
        // Predicated region
        $region53: #{tpu_custom_call.1} parent=11 // pred_check
          %p446 = pneg %p287
        $region54: #{tpu_custom_call.1} parent=11 // pred_check_branch
          %448 = sbr.rel (%p446) target = $region56
        $region55: #{tpu_custom_call.1} parent=11 // pred_region
          %s450 = ssub.s32 16, 16
          %451 = vsyncadd [#allocation21], %s450
          %s453 = sshll.u32 [#allocation20], 4
          %s454 = int_to_ptr.vmem [resolvable:$true] %s453
          %456 = dma.hbm_to_vmem [thread:$0]  %s11, 16, %s454, [#allocation21]
        $region56: #{tpu_custom_call.1} parent=11 // pred_fallthru
          _
      $region12: #{tpu_custom_call.1} parent=5 // pred_fallthru
        _
      %p457 = scmp.lt.s32.totalorder %s30, 2
      // Predicated region
      $region57: #{tpu_custom_call.1} parent=5 // pred_check
        %p458 = pneg %p457
      $region58: #{tpu_custom_call.1} parent=5 // pred_check_branch
        %460 = sbr.rel (%p458) target = $region60
      $region59: #{tpu_custom_call.1} parent=5 // pred_region
        // Predicated region
        $region61: #{tpu_custom_call.1} parent=59 // pred_check
          %p461 = pneg %p50
        $region62: #{tpu_custom_call.1} parent=59 // pred_check_branch
          %463 = sbr.rel (%p461) target = $region64
        $region63: #{tpu_custom_call.1} parent=59 // pred_region
          %s464 = sand.u32 %s40, 1
          %s465 = scalar_lea.sflag [#allocation3], %s464
          %s466 = sand.u32 %s40, 1
          %s467 = smul.addr %s466, 8
          %s468 = scalar_lea.vmem [#allocation2], %s467
          %s470 = ssub.s32 128, 128
          %471 = vsyncadd %s465, %s470
          %s472 = smul.addr %s30, 128
          %s473 = scalar_lea.hbm %s0, %s472
          %s475 = sshll.u32 %s468, 4
          %s476 = int_to_ptr.vmem [resolvable:$true] %s475
          %478 = dma.hbm_to_vmem [thread:$0]  %s473, 128, %s476, %s465
        $region64: #{tpu_custom_call.1} parent=59 // pred_fallthru
          _
      $region60: #{tpu_custom_call.1} parent=5 // pred_fallthru
        _
      %p479 = scmp.le.s32.totalorder 1, %s30
      %p480 = scmp.lt.s32.totalorder %s30, 3
      %p481 = pnand %p479, %p480
      %p482 = pneg %p481
      // Predicated region
      $region65: #{tpu_custom_call.1} parent=5 // pred_check
        _
      $region66: #{tpu_custom_call.1} parent=5 // pred_check_branch
        %484 = sbr.rel (%p481) target = $region68
      $region67: #{tpu_custom_call.1} parent=5 // pred_region
        %s485 = ssub.s32 %s30, 1
        %s486 = sand.u32 %s43, 1
        %s487 = scalar_lea.sflag [#allocation3], %s486
        %s488 = sand.u32 %s43, 1
        %s489 = smul.addr %s488, 8
        %s490 = scalar_lea.vmem [#allocation2], %s489
        // Predicated region
        $region69: #{tpu_custom_call.1} parent=67 // pred_check
          %p491 = pneg %p56
        $region70: #{tpu_custom_call.1} parent=67 // pred_check_branch
          %493 = sbr.rel (%p491) target = $region72
        $region71: #{tpu_custom_call.1} parent=67 // pred_region
          %494 = dma.done %s487, 128
        $region72: #{tpu_custom_call.1} parent=67 // pred_fallthru
          _
        // Predicated region
        $region73: #{tpu_custom_call.1} parent=67 // pred_check
          %p495 = pneg %p77
        $region74: #{tpu_custom_call.1} parent=67 // pred_check_branch
          %497 = sbr.rel (%p495) target = $region76
        $region75: #{tpu_custom_call.1} parent=67 // pred_region
          %498 = dma.done [#allocation6], 16
        $region76: #{tpu_custom_call.1} parent=67 // pred_fallthru
          _
        // Predicated region
        $region77: #{tpu_custom_call.1} parent=67 // pred_check
          %p499 = pneg %p98
        $region78: #{tpu_custom_call.1} parent=67 // pred_check_branch
          %501 = sbr.rel (%p499) target = $region80
        $region79: #{tpu_custom_call.1} parent=67 // pred_region
          %502 = dma.done [#allocation6], 16
        $region80: #{tpu_custom_call.1} parent=67 // pred_fallthru
          _
        // Predicated region
        $region81: #{tpu_custom_call.1} parent=67 // pred_check
          %p503 = pneg %p119
        $region82: #{tpu_custom_call.1} parent=67 // pred_check_branch
          %505 = sbr.rel (%p503) target = $region84
        $region83: #{tpu_custom_call.1} parent=67 // pred_region
          %506 = dma.done [#allocation9], 1024
        $region84: #{tpu_custom_call.1} parent=67 // pred_fallthru
          _
        // Predicated region
        $region85: #{tpu_custom_call.1} parent=67 // pred_check
          %p507 = pneg %p140
        $region86: #{tpu_custom_call.1} parent=67 // pred_check_branch
          %509 = sbr.rel (%p507) target = $region88
        $region87: #{tpu_custom_call.1} parent=67 // pred_region
          %510 = dma.done [#allocation9], 1024
        $region88: #{tpu_custom_call.1} parent=67 // pred_fallthru
          _
        // Predicated region
        $region89: #{tpu_custom_call.1} parent=67 // pred_check
          %p511 = pneg %p161
        $region90: #{tpu_custom_call.1} parent=67 // pred_check_branch
          %513 = sbr.rel (%p511) target = $region92
        $region91: #{tpu_custom_call.1} parent=67 // pred_region
          %514 = dma.done [#allocation12], 16
        $region92: #{tpu_custom_call.1} parent=67 // pred_fallthru
          _
        // Predicated region
        $region93: #{tpu_custom_call.1} parent=67 // pred_check
          %p515 = pneg %p182
        $region94: #{tpu_custom_call.1} parent=67 // pred_check_branch
          %517 = sbr.rel (%p515) target = $region96
        $region95: #{tpu_custom_call.1} parent=67 // pred_region
          %518 = dma.done [#allocation12], 16
        $region96: #{tpu_custom_call.1} parent=67 // pred_fallthru
          _
        // Predicated region
        $region97: #{tpu_custom_call.1} parent=67 // pred_check
          %p519 = pneg %p203
        $region98: #{tpu_custom_call.1} parent=67 // pred_check_branch
          %521 = sbr.rel (%p519) target = $region100
        $region99: #{tpu_custom_call.1} parent=67 // pred_region
          %522 = dma.done [#allocation15], 16
        $region100: #{tpu_custom_call.1} parent=67 // pred_fallthru
          _
        // Predicated region
        $region101: #{tpu_custom_call.1} parent=67 // pred_check
          %p523 = pneg %p224
        $region102: #{tpu_custom_call.1} parent=67 // pred_check_branch
          %525 = sbr.rel (%p523) target = $region104
        $region103: #{tpu_custom_call.1} parent=67 // pred_region
          %526 = dma.done [#allocation15], 512
        $region104: #{tpu_custom_call.1} parent=67 // pred_fallthru
          _
        // Predicated region
        $region105: #{tpu_custom_call.1} parent=67 // pred_check
          %p527 = pneg %p245
        $region106: #{tpu_custom_call.1} parent=67 // pred_check_branch
          %529 = sbr.rel (%p527) target = $region108
        $region107: #{tpu_custom_call.1} parent=67 // pred_region
          %530 = dma.done [#allocation18], 16
        $region108: #{tpu_custom_call.1} parent=67 // pred_fallthru
          _
        // Predicated region
        $region109: #{tpu_custom_call.1} parent=67 // pred_check
          %p531 = pneg %p266
        $region110: #{tpu_custom_call.1} parent=67 // pred_check_branch
          %533 = sbr.rel (%p531) target = $region112
        $region111: #{tpu_custom_call.1} parent=67 // pred_region
          %534 = dma.done [#allocation18], 1024
        $region112: #{tpu_custom_call.1} parent=67 // pred_fallthru
          _
        // Predicated region
        $region113: #{tpu_custom_call.1} parent=67 // pred_check
          %p535 = pneg %p287
        $region114: #{tpu_custom_call.1} parent=67 // pred_check_branch
          %537 = sbr.rel (%p535) target = $region116
        $region115: #{tpu_custom_call.1} parent=67 // pred_region
          %538 = dma.done [#allocation21], 16
        $region116: #{tpu_custom_call.1} parent=67 // pred_fallthru
          _
        %s539 = sand.u32 %s43, 1
        %s540 = scalar_lea.sflag [#allocation3], %s539
        %s541 = sand.u32 %s43, 1
        %s542 = smul.addr %s541, 8
        %s543 = scalar_lea.vmem [#allocation2], %s542
        %p544 = pneg %p56
        %p545 = pneg %p53
        %p546 = pneg %p77
        %p547 = pneg %p74
        %p548 = pneg %p98
        %p549 = pneg %p95
        %p550 = pneg %p119
        %p551 = pneg %p116
        %p552 = pneg %p140
        %p553 = pneg %p137
        %p554 = pneg %p161
        %p555 = pneg %p158
        %p556 = pneg %p182
        %p557 = pneg %p179
        %p558 = pneg %p203
        %p559 = pneg %p200
        %p560 = pneg %p224
        %p561 = pneg %p221
        %p562 = pneg %p245
        %p563 = pneg %p242
        %p564 = pneg %p266
        %p565 = pneg %p263
        %p566 = pneg %p287
        %p567 = pneg %p284
        %p568 = pneg %p313
        %p569 = pneg %p310
        %s570 = sand.u32 %s300, 1
        %s571 = scalar_lea.sflag [#allocation4], %s570
        %s572 = sand.u32 %s300, 1
        %s573 = smul.addr %s572, 8
        %s574 = scalar_lea.vmem [#allocation22], %s573
        %v575 = vld [vmem:[%s490] sm:$0xff]
        %v576 = vld [vmem:[#allocation5] sm:$0x1]
        %v577 = vld [vmem:[#allocation7] sm:$0x1]
        %vm578 = vcmask 261120
        %v579 = vsel %vm578, %v575, 0.0
        %580 = vadd.xlane.f32.xlu0 %v579
        %v581 = vpop.xlane.xlu0 %580
        %v582 = vrcp.pop 32.0
        %v583 = vmul.f32 %v581, %v582
        %v584 = vmul.f32 %v575, %v575
        %v585 = vsel %vm578, %v584, 0.0
        %586 = vadd.xlane.f32.xlu0 %v585
        %v587 = vpop.xlane.xlu0 %586
        %v588 = vmul.f32 %v587, %v582
        %v589 = vmul.f32 %v583, %v583
        %v590 = vsub.f32 %v588, %v589
        %v591 = vmax.f32 %v590, 0.0
        %v592 = vsub.f32 %v575, %v583
        %v593 = vadd.f32 %v591, 1e-05
        %v594 = vrsqrt.pop %v593
        %v595 = vmul.f32 %v592, %v594
        %v597 = vlaneseq
        %v598 = vshrl.u32 %v597, 7
        %v599 = vsub.s32 0, %v598
        %v600 = vrot.slane %v576, %v599
        %v602 = vmul.f32 %v595, %v600
        %v604 = vlaneseq
        %v605 = vshrl.u32 %v604, 7
        %v606 = vsub.s32 0, %v605
        %v607 = vrot.slane %v577, %v606
        %v609 = vadd.f32 %v602, %v607
        %v610 = vld [vmem:[#allocation8] sm:$0xff]
        %v611 = vld [vmem:[#allocation8 + $0x8] sm:$0xff]
        %v612 = vld [vmem:[#allocation8 + $0x10] sm:$0xff]
        %v613 = vld [vmem:[#allocation8 + $0x18] sm:$0xff]
        %v614 = vld [vmem:[#allocation8 + $0x20] sm:$0xff]
        %v615 = vld [vmem:[#allocation8 + $0x28] sm:$0xff]
        %v616 = vld [vmem:[#allocation8 + $0x30] sm:$0xff]
        %v617 = vld [vmem:[#allocation8 + $0x38] sm:$0xff]
        %v619 = vsel %vm578, %v609, 0
        %621 = vmatprep.subr.mxu0 %v611
        %622 = vmatpush1.msra.mxu0 %v610
        %623 = vmatprep.subr.mxu0 %v613
        %624 = vmatpush1.msra.mxu0 %v612
        %625 = vmatprep.subr.mxu0 %v615
        %626 = vmatpush1.msra.mxu0 %v614
        %627 = vmatprep.subr.mxu0 %v617
        %628 = vmatpush1.msra.mxu0 %v616
        %629 = vmatprep.subr.mxu0 0.0
        %630 = vmatpush1.msra.mxu0 0.0
        %631 = vmatprep.subr.mxu0 0.0
        %632 = vmatpush1.msra.mxu0 0.0
        %633 = vmatprep.subr.mxu0 0.0
        %634 = vmatpush1.msra.mxu0 0.0
        %635 = vmatprep.subr.mxu0 0.0
        %636 = vmatpush1.msra.mxu0 0.0
        %637 = vmatprep.subr.mxu0 0.0
        %638 = vmatpush1.msra.mxu0 0.0
        %639 = vmatprep.subr.mxu0 0.0
        %640 = vmatpush1.msra.mxu0 0.0
        %641 = vmatprep.subr.mxu0 0.0
        %642 = vmatpush1.msra.mxu0 0.0
        %643 = vmatprep.subr.mxu0 0.0
        %644 = vmatpush1.msra.mxu0 0.0
        %645 = vmatprep.subr.mxu0 0.0
        %646 = vmatpush1.msra.mxu0 0.0
        %647 = vmatprep.subr.mxu0 0.0
        %648 = vmatpush1.msra.mxu0 0.0
        %649 = vmatprep.subr.mxu0 0.0
        %650 = vmatpush1.msra.mxu0 0.0
        %651 = vmatprep.subr.mxu0 0.0
        %652 = vmatpush1.msra.mxu0 0.0
        %653 = vmatprep.subr.mxu0 0.0
        %654 = vmatpush1.msra.mxu0 0.0
        %655 = vmatprep.subr.mxu0 0.0
        %656 = vmatpush1.msra.mxu0 0.0
        %657 = vmatprep.subr.mxu0 0.0
        %658 = vmatpush1.msra.mxu0 0.0
        %659 = vmatprep.subr.mxu0 0.0
        %660 = vmatpush1.msra.mxu0 0.0
        %661 = vmatprep.subr.mxu0 0.0
        %662 = vmatpush1.msra.mxu0 0.0
        %663 = vmatprep.subr.mxu0 0.0
        %664 = vmatpush1.msra.mxu0 0.0
        %665 = vmatprep.subr.mxu0 0.0
        %666 = vmatpush1.msra.mxu0 0.0
        %667 = vmatprep.subr.mxu0 0.0
        %668 = vmatpush1.msra.mxu0 0.0
        %669 = vmatprep.subr.mxu0 0.0
        %670 = vmatpush1.msra.mxu0 0.0
        %671 = vmatprep.subr.mxu0 0.0
        %672 = vmatpush1.msra.mxu0 0.0
        %673 = vmatprep.subr.mxu0 0.0
        %674 = vmatpush1.msra.mxu0 0.0
        %675 = vmatprep.subr.mxu0 0.0
        %676 = vmatpush1.msra.mxu0 0.0
        %677 = vmatprep.subr.mxu0 0.0
        %678 = vmatpush1.msra.mxu0 0.0
        %679 = vmatprep.subr.mxu0 0.0
        %680 = vmatpush1.msra.mxu0 0.0
        %681 = vmatprep.subr.mxu0 0.0
        %682 = vmatpush1.msra.mxu0 0.0
        %683 = vmatprep.subr.mxu0 0.0
        %684 = vmatpush1.msra.mxu0 0.0
        %685 = vmatprep.mubr.f32.mxu0 0.0
        %686 = vmatmul.mubr.f32.gmra.mrb[0].mxu0 %v619
        %v687 = vpop.f32.mrb[0].mxu0
        %v688 = vadd.f32 0.0, %v687
        %v689 = vpop.f32.mrb[0].mxu0
        %v690 = vadd.f32 0.0, %v689
        %691 = vdwg.mxu0
        %v692 = vmul.f32 %v688, 0.25
        %694 = vrot.lane.b32.xlu0 %v692, 112
        %v695 = vpop.permute.xlu0 %694
        %697 = vrot.lane.b32.xlu0 %v692, 96
        %v698 = vpop.permute.xlu0 %697
        %700 = vrot.lane.b32.xlu0 %v692, 80
        %v701 = vpop.permute.xlu0 %700
        %v703 = vcombine.low %v692, %v698
        %v704 = vcombine.high %v692, %v698
        %v706 = vunpack.c.l.s4 1983009808
        %v707 = vunpack.c.0.s8 %v706
        %v708 = vlaneseq
        %v709 = vshrl.u32 %v708, 7
        %v710 = vsub.s32 %v707, %v709
        %v711 = vrot.slane %v703, %v710
        %v713 = vunpack.c.l.s4 1983009808
        %v714 = vunpack.c.0.s8 %v713
        %v715 = vlaneseq
        %v716 = vshrl.u32 %v715, 7
        %v717 = vsub.s32 %v714, %v716
        %v718 = vrot.slane %v704, %v717
        %v719 = vcombine.low %v695, %v701
        %v720 = vcombine.high %v695, %v701
        %v722 = vunpack.c.l.s4 1983009808
        %v723 = vunpack.c.0.s8 %v722
        %v724 = vlaneseq
        %v725 = vshrl.u32 %v724, 7
        %v726 = vsub.s32 %v723, %v725
        %v727 = vrot.slane %v719, %v726
        %v729 = vunpack.c.l.s4 1983009808
        %v730 = vunpack.c.0.s8 %v729
        %v731 = vlaneseq
        %v732 = vshrl.u32 %v731, 7
        %v733 = vsub.s32 %v730, %v732
        %v734 = vrot.slane %v720, %v733
        %v735 = vcombine.low %v711, %v727
        %v736 = vcombine.high %v711, %v727
        %v738 = vunpack.c.l.s4 1934713408
        %v739 = vunpack.c.0.s8 %v738
        %v740 = vlaneseq
        %v741 = vshrl.u32 %v740, 7
        %v742 = vsub.s32 %v739, %v741
        %v743 = vrot.slane %v735, %v742
        %v745 = vunpack.c.l.s4 1934713408
        %v746 = vunpack.c.0.s8 %v745
        %v747 = vlaneseq
        %v748 = vshrl.u32 %v747, 7
        %v749 = vsub.s32 %v746, %v748
        %v750 = vrot.slane %v736, %v749
        %v751 = vcombine.low %v718, %v734
        %v752 = vcombine.high %v718, %v734
        %v754 = vunpack.c.l.s4 1934713408
        %v755 = vunpack.c.0.s8 %v754
        %v756 = vlaneseq
        %v757 = vshrl.u32 %v756, 7
        %v758 = vsub.s32 %v755, %v757
        %v759 = vrot.slane %v751, %v758
        %v761 = vunpack.c.l.s4 1934713408
        %v762 = vunpack.c.0.s8 %v761
        %v763 = vlaneseq
        %v764 = vshrl.u32 %v763, 7
        %v765 = vsub.s32 %v762, %v764
        %v766 = vrot.slane %v752, %v765
        %v767 = vcombine.high %v743, 0.0
        %v768 = vcombine.high %v750, 0.0
        %v769 = vcombine.high %v759, 0.0
        %v770 = vcombine.high %v766, 0.0
        %v771 = vcombine.low %v743, %v750
        %v773 = vunpack.c.l.s4 1983009808
        %v774 = vunpack.c.0.s8 %v773
        %v775 = vlaneseq
        %v776 = vshrl.u32 %v775, 7
        %v777 = vsub.s32 %v774, %v776
        %v778 = vrot.slane %v771, %v777
        %v779 = vcombine.low %v767, %v768
        %v781 = vunpack.c.l.s4 1983009808
        %v782 = vunpack.c.0.s8 %v781
        %v783 = vlaneseq
        %v784 = vshrl.u32 %v783, 7
        %v785 = vsub.s32 %v782, %v784
        %v786 = vrot.slane %v779, %v785
        %v787 = vcombine.low %v759, %v766
        %v789 = vunpack.c.l.s4 1983009808
        %v790 = vunpack.c.0.s8 %v789
        %v791 = vlaneseq
        %v792 = vshrl.u32 %v791, 7
        %v793 = vsub.s32 %v790, %v792
        %v794 = vrot.slane %v787, %v793
        %v795 = vcombine.low %v769, %v770
        %v797 = vunpack.c.l.s4 1983009808
        %v798 = vunpack.c.0.s8 %v797
        %v799 = vlaneseq
        %v800 = vshrl.u32 %v799, 7
        %v801 = vsub.s32 %v798, %v800
        %v802 = vrot.slane %v795, %v801
        %v803 = vcombine.low %v778, %v786
        %v804 = vcombine.high %v778, %v786
        %v806 = vunpack.c.l.s4 1934713408
        %v807 = vunpack.c.0.s8 %v806
        %v808 = vlaneseq
        %v809 = vshrl.u32 %v808, 7
        %v810 = vsub.s32 %v807, %v809
        %v811 = vrot.slane %v803, %v810
        %v813 = vunpack.c.l.s4 1934713408
        %v814 = vunpack.c.0.s8 %v813
        %v815 = vlaneseq
        %v816 = vshrl.u32 %v815, 7
        %v817 = vsub.s32 %v814, %v816
        %v818 = vrot.slane %v804, %v817
        %v819 = vcombine.low %v794, %v802
        %v820 = vcombine.high %v794, %v802
        %v822 = vunpack.c.l.s4 1934713408
        %v823 = vunpack.c.0.s8 %v822
        %v824 = vlaneseq
        %v825 = vshrl.u32 %v824, 7
        %v826 = vsub.s32 %v823, %v825
        %v827 = vrot.slane %v819, %v826
        %v829 = vunpack.c.l.s4 1934713408
        %v830 = vunpack.c.0.s8 %v829
        %v831 = vlaneseq
        %v832 = vshrl.u32 %v831, 7
        %v833 = vsub.s32 %v830, %v832
        %v834 = vrot.slane %v820, %v833
        %v835 = vcombine.low %v811, %v827
        %v836 = vcombine.high %v811, %v827
        %v837 = vcombine.low %v818, %v834
        %v838 = vcombine.high %v818, %v834
        %840 = vrot.lane.b32.xlu0 %v688, 112
        %v841 = vpop.permute.xlu0 %840
        %842 = vrot.lane.b32.xlu0 %v688, 96
        %v843 = vpop.permute.xlu0 %842
        %844 = vrot.lane.b32.xlu0 %v688, 80
        %v845 = vpop.permute.xlu0 %844
        %846 = vrot.lane.b32.xlu0 %v688, 64
        %v847 = vpop.permute.xlu0 %846
        %848 = vrot.lane.b32.xlu0 %v841, 64
        %v849 = vpop.permute.xlu0 %848
        %850 = vrot.lane.b32.xlu0 %v843, 64
        %v851 = vpop.permute.xlu0 %850
        %852 = vrot.lane.b32.xlu0 %v845, 64
        %v853 = vpop.permute.xlu0 %852
        %v858 = vcombine.low %v847, %v851
        %v859 = vcombine.high %v847, %v851
        %v861 = vunpack.c.l.s4 1983009808
        %v862 = vunpack.c.0.s8 %v861
        %v863 = vlaneseq
        %v864 = vshrl.u32 %v863, 7
        %v865 = vsub.s32 %v862, %v864
        %v866 = vrot.slane %v858, %v865
        %v868 = vunpack.c.l.s4 1983009808
        %v869 = vunpack.c.0.s8 %v868
        %v870 = vlaneseq
        %v871 = vshrl.u32 %v870, 7
        %v872 = vsub.s32 %v869, %v871
        %v873 = vrot.slane %v859, %v872
        %v874 = vcombine.low %v849, %v853
        %v875 = vcombine.high %v849, %v853
        %v877 = vunpack.c.l.s4 1983009808
        %v878 = vunpack.c.0.s8 %v877
        %v879 = vlaneseq
        %v880 = vshrl.u32 %v879, 7
        %v881 = vsub.s32 %v878, %v880
        %v882 = vrot.slane %v874, %v881
        %v884 = vunpack.c.l.s4 1983009808
        %v885 = vunpack.c.0.s8 %v884
        %v886 = vlaneseq
        %v887 = vshrl.u32 %v886, 7
        %v888 = vsub.s32 %v885, %v887
        %v889 = vrot.slane %v875, %v888
        %v890 = vcombine.low %v866, %v882
        %v891 = vcombine.high %v866, %v882
        %v893 = vunpack.c.l.s4 1934713408
        %v894 = vunpack.c.0.s8 %v893
        %v895 = vlaneseq
        %v896 = vshrl.u32 %v895, 7
        %v897 = vsub.s32 %v894, %v896
        %v898 = vrot.slane %v890, %v897
        %v900 = vunpack.c.l.s4 1934713408
        %v901 = vunpack.c.0.s8 %v900
        %v902 = vlaneseq
        %v903 = vshrl.u32 %v902, 7
        %v904 = vsub.s32 %v901, %v903
        %v905 = vrot.slane %v891, %v904
        %v906 = vcombine.low %v873, %v889
        %v907 = vcombine.high %v873, %v889
        %v909 = vunpack.c.l.s4 1934713408
        %v910 = vunpack.c.0.s8 %v909
        %v911 = vlaneseq
        %v912 = vshrl.u32 %v911, 7
        %v913 = vsub.s32 %v910, %v912
        %v914 = vrot.slane %v906, %v913
        %v916 = vunpack.c.l.s4 1934713408
        %v917 = vunpack.c.0.s8 %v916
        %v918 = vlaneseq
        %v919 = vshrl.u32 %v918, 7
        %v920 = vsub.s32 %v917, %v919
        %v921 = vrot.slane %v907, %v920
        %v922 = vcombine.high %v898, 0.0
        %v923 = vcombine.high %v905, 0.0
        %v924 = vcombine.high %v914, 0.0
        %v925 = vcombine.high %v921, 0.0
        %v926 = vcombine.low %v898, %v905
        %v928 = vunpack.c.l.s4 1983009808
        %v929 = vunpack.c.0.s8 %v928
        %v930 = vlaneseq
        %v931 = vshrl.u32 %v930, 7
        %v932 = vsub.s32 %v929, %v931
        %v933 = vrot.slane %v926, %v932
        %v934 = vcombine.low %v922, %v923
        %v936 = vunpack.c.l.s4 1983009808
        %v937 = vunpack.c.0.s8 %v936
        %v938 = vlaneseq
        %v939 = vshrl.u32 %v938, 7
        %v940 = vsub.s32 %v937, %v939
        %v941 = vrot.slane %v934, %v940
        %v942 = vcombine.low %v914, %v921
        %v944 = vunpack.c.l.s4 1983009808
        %v945 = vunpack.c.0.s8 %v944
        %v946 = vlaneseq
        %v947 = vshrl.u32 %v946, 7
        %v948 = vsub.s32 %v945, %v947
        %v949 = vrot.slane %v942, %v948
        %v950 = vcombine.low %v924, %v925
        %v952 = vunpack.c.l.s4 1983009808
        %v953 = vunpack.c.0.s8 %v952
        %v954 = vlaneseq
        %v955 = vshrl.u32 %v954, 7
        %v956 = vsub.s32 %v953, %v955
        %v957 = vrot.slane %v950, %v956
        %v958 = vcombine.low %v933, %v941
        %v959 = vcombine.high %v933, %v941
        %v961 = vunpack.c.l.s4 1934713408
        %v962 = vunpack.c.0.s8 %v961
        %v963 = vlaneseq
        %v964 = vshrl.u32 %v963, 7
        %v965 = vsub.s32 %v962, %v964
        %v966 = vrot.slane %v958, %v965
        %v968 = vunpack.c.l.s4 1934713408
        %v969 = vunpack.c.0.s8 %v968
        %v970 = vlaneseq
        %v971 = vshrl.u32 %v970, 7
        %v972 = vsub.s32 %v969, %v971
        %v973 = vrot.slane %v959, %v972
        %v974 = vcombine.low %v949, %v957
        %v975 = vcombine.high %v949, %v957
        %v977 = vunpack.c.l.s4 1934713408
        %v978 = vunpack.c.0.s8 %v977
        %v979 = vlaneseq
        %v980 = vshrl.u32 %v979, 7
        %v981 = vsub.s32 %v978, %v980
        %v982 = vrot.slane %v974, %v981
        %v984 = vunpack.c.l.s4 1934713408
        %v985 = vunpack.c.0.s8 %v984
        %v986 = vlaneseq
        %v987 = vshrl.u32 %v986, 7
        %v988 = vsub.s32 %v985, %v987
        %v989 = vrot.slane %v975, %v988
        %v990 = vcombine.low %v966, %v982
        %v991 = vcombine.high %v966, %v982
        %v992 = vcombine.low %v973, %v989
        %v993 = vcombine.high %v973, %v989
        %995 = vrot.lane.b32.xlu0 %v690, 112
        %v996 = vpop.permute.xlu0 %995
        %998 = vrot.lane.b32.xlu0 %v690, 96
        %v999 = vpop.permute.xlu0 %998
        %1001 = vrot.lane.b32.xlu0 %v690, 80
        %v1002 = vpop.permute.xlu0 %1001
        %v1004 = vcombine.low %v690, %v999
        %v1005 = vcombine.high %v690, %v999
        %v1007 = vunpack.c.l.s4 1983009808
        %v1008 = vunpack.c.0.s8 %v1007
        %v1009 = vlaneseq
        %v1010 = vshrl.u32 %v1009, 7
        %v1011 = vsub.s32 %v1008, %v1010
        %v1012 = vrot.slane %v1004, %v1011
        %v1014 = vunpack.c.l.s4 1983009808
        %v1015 = vunpack.c.0.s8 %v1014
        %v1016 = vlaneseq
        %v1017 = vshrl.u32 %v1016, 7
        %v1018 = vsub.s32 %v1015, %v1017
        %v1019 = vrot.slane %v1005, %v1018
        %v1020 = vcombine.low %v996, %v1002
        %v1021 = vcombine.high %v996, %v1002
        %v1023 = vunpack.c.l.s4 1983009808
        %v1024 = vunpack.c.0.s8 %v1023
        %v1025 = vlaneseq
        %v1026 = vshrl.u32 %v1025, 7
        %v1027 = vsub.s32 %v1024, %v1026
        %v1028 = vrot.slane %v1020, %v1027
        %v1030 = vunpack.c.l.s4 1983009808
        %v1031 = vunpack.c.0.s8 %v1030
        %v1032 = vlaneseq
        %v1033 = vshrl.u32 %v1032, 7
        %v1034 = vsub.s32 %v1031, %v1033
        %v1035 = vrot.slane %v1021, %v1034
        %v1036 = vcombine.low %v1012, %v1028
        %v1037 = vcombine.high %v1012, %v1028
        %v1039 = vunpack.c.l.s4 1934713408
        %v1040 = vunpack.c.0.s8 %v1039
        %v1041 = vlaneseq
        %v1042 = vshrl.u32 %v1041, 7
        %v1043 = vsub.s32 %v1040, %v1042
        %v1044 = vrot.slane %v1036, %v1043
        %v1046 = vunpack.c.l.s4 1934713408
        %v1047 = vunpack.c.0.s8 %v1046
        %v1048 = vlaneseq
        %v1049 = vshrl.u32 %v1048, 7
        %v1050 = vsub.s32 %v1047, %v1049
        %v1051 = vrot.slane %v1037, %v1050
        %v1052 = vcombine.low %v1019, %v1035
        %v1053 = vcombine.high %v1019, %v1035
        %v1055 = vunpack.c.l.s4 1934713408
        %v1056 = vunpack.c.0.s8 %v1055
        %v1057 = vlaneseq
        %v1058 = vshrl.u32 %v1057, 7
        %v1059 = vsub.s32 %v1056, %v1058
        %v1060 = vrot.slane %v1052, %v1059
        %v1062 = vunpack.c.l.s4 1934713408
        %v1063 = vunpack.c.0.s8 %v1062
        %v1064 = vlaneseq
        %v1065 = vshrl.u32 %v1064, 7
        %v1066 = vsub.s32 %v1063, %v1065
        %v1067 = vrot.slane %v1053, %v1066
        %v1068 = vcombine.high %v1044, 0.0
        %v1069 = vcombine.high %v1051, 0.0
        %v1070 = vcombine.high %v1060, 0.0
        %v1071 = vcombine.high %v1067, 0.0
        %v1072 = vcombine.low %v1044, %v1051
        %v1074 = vunpack.c.l.s4 1983009808
        %v1075 = vunpack.c.0.s8 %v1074
        %v1076 = vlaneseq
        %v1077 = vshrl.u32 %v1076, 7
        %v1078 = vsub.s32 %v1075, %v1077
        %v1079 = vrot.slane %v1072, %v1078
        %v1080 = vcombine.low %v1068, %v1069
        %v1082 = vunpack.c.l.s4 1983009808
        %v1083 = vunpack.c.0.s8 %v1082
        %v1084 = vlaneseq
        %v1085 = vshrl.u32 %v1084, 7
        %v1086 = vsub.s32 %v1083, %v1085
        %v1087 = vrot.slane %v1080, %v1086
        %v1088 = vcombine.low %v1060, %v1067
        %v1090 = vunpack.c.l.s4 1983009808
        %v1091 = vunpack.c.0.s8 %v1090
        %v1092 = vlaneseq
        %v1093 = vshrl.u32 %v1092, 7
        %v1094 = vsub.s32 %v1091, %v1093
        %v1095 = vrot.slane %v1088, %v1094
        %v1096 = vcombine.low %v1070, %v1071
        %v1098 = vunpack.c.l.s4 1983009808
        %v1099 = vunpack.c.0.s8 %v1098
        %v1100 = vlaneseq
        %v1101 = vshrl.u32 %v1100, 7
        %v1102 = vsub.s32 %v1099, %v1101
        %v1103 = vrot.slane %v1096, %v1102
        %v1104 = vcombine.low %v1079, %v1087
        %v1105 = vcombine.high %v1079, %v1087
        %v1107 = vunpack.c.l.s4 1934713408
        %v1108 = vunpack.c.0.s8 %v1107
        %v1109 = vlaneseq
        %v1110 = vshrl.u32 %v1109, 7
        %v1111 = vsub.s32 %v1108, %v1110
        %v1112 = vrot.slane %v1104, %v1111
        %v1114 = vunpack.c.l.s4 1934713408
        %v1115 = vunpack.c.0.s8 %v1114
        %v1116 = vlaneseq
        %v1117 = vshrl.u32 %v1116, 7
        %v1118 = vsub.s32 %v1115, %v1117
        %v1119 = vrot.slane %v1105, %v1118
        %v1120 = vcombine.low %v1095, %v1103
        %v1121 = vcombine.high %v1095, %v1103
        %v1123 = vunpack.c.l.s4 1934713408
        %v1124 = vunpack.c.0.s8 %v1123
        %v1125 = vlaneseq
        %v1126 = vshrl.u32 %v1125, 7
        %v1127 = vsub.s32 %v1124, %v1126
        %v1128 = vrot.slane %v1120, %v1127
        %v1130 = vunpack.c.l.s4 1934713408
        %v1131 = vunpack.c.0.s8 %v1130
        %v1132 = vlaneseq
        %v1133 = vshrl.u32 %v1132, 7
        %v1134 = vsub.s32 %v1131, %v1133
        %v1135 = vrot.slane %v1121, %v1134
        %v1136 = vcombine.low %v1112, %v1128
        %v1137 = vcombine.high %v1112, %v1128
        %v1138 = vcombine.low %v1119, %v1135
        %v1139 = vcombine.high %v1119, %v1135
        %vm1140 = vcmask 130048
        %v1142 = vsel %vm1140, %v835, 0
        %v1145 = vsel %vm1140, %v990, 0
        %1147 = vmatprep.subr.mxu0 0.0
        %1148 = vmatpush1.xpose.msra.mxu0 %v1145
        %1149 = vmatprep.subr.mxu0 0.0
        %1150 = vmatpush1.xpose.msra.mxu0 0.0
        %1151 = vmatprep.subr.mxu0 0.0
        %1152 = vmatpush1.xpose.msra.mxu0 0.0
        %1153 = vmatprep.subr.mxu0 0.0
        %1154 = vmatpush1.xpose.msra.mxu0 0.0
        %1155 = vmatprep.subr.mxu0 0.0
        %1156 = vmatpush1.xpose.msra.mxu0 0.0
        %1157 = vmatprep.subr.mxu0 0.0
        %1158 = vmatpush1.xpose.msra.mxu0 0.0
        %1159 = vmatprep.subr.mxu0 0.0
        %1160 = vmatpush1.xpose.msra.mxu0 0.0
        %1161 = vmatprep.subr.mxu0 0.0
        %1162 = vmatpush1.xpose.msra.mxu0 0.0
        %1163 = vmatprep.subr.mxu0 0.0
        %1164 = vmatpush1.xpose.msra.mxu0 0.0
        %1165 = vmatprep.subr.mxu0 0.0
        %1166 = vmatpush1.xpose.msra.mxu0 0.0
        %1167 = vmatprep.subr.mxu0 0.0
        %1168 = vmatpush1.xpose.msra.mxu0 0.0
        %1169 = vmatprep.subr.mxu0 0.0
        %1170 = vmatpush1.xpose.msra.mxu0 0.0
        %1171 = vmatprep.subr.mxu0 0.0
        %1172 = vmatpush1.xpose.msra.mxu0 0.0
        %1173 = vmatprep.subr.mxu0 0.0
        %1174 = vmatpush1.xpose.msra.mxu0 0.0
        %1175 = vmatprep.subr.mxu0 0.0
        %1176 = vmatpush1.xpose.msra.mxu0 0.0
        %1177 = vmatprep.subr.mxu0 0.0
        %1178 = vmatpush1.xpose.msra.mxu0 0.0
        %1179 = vmatprep.subr.mxu0 0.0
        %1180 = vmatpush1.xpose.msra.mxu0 0.0
        %1181 = vmatprep.subr.mxu0 0.0
        %1182 = vmatpush1.xpose.msra.mxu0 0.0
        %1183 = vmatprep.subr.mxu0 0.0
        %1184 = vmatpush1.xpose.msra.mxu0 0.0
        %1185 = vmatprep.subr.mxu0 0.0
        %1186 = vmatpush1.xpose.msra.mxu0 0.0
        %1187 = vmatprep.subr.mxu0 0.0
        %1188 = vmatpush1.xpose.msra.mxu0 0.0
        %1189 = vmatprep.subr.mxu0 0.0
        %1190 = vmatpush1.xpose.msra.mxu0 0.0
        %1191 = vmatprep.subr.mxu0 0.0
        %1192 = vmatpush1.xpose.msra.mxu0 0.0
        %1193 = vmatprep.subr.mxu0 0.0
        %1194 = vmatpush1.xpose.msra.mxu0 0.0
        %1195 = vmatprep.subr.mxu0 0.0
        %1196 = vmatpush1.xpose.msra.mxu0 0.0
        %1197 = vmatprep.subr.mxu0 0.0
        %1198 = vmatpush1.xpose.msra.mxu0 0.0
        %1199 = vmatprep.subr.mxu0 0.0
        %1200 = vmatpush1.xpose.msra.mxu0 0.0
        %1201 = vmatprep.subr.mxu0 0.0
        %1202 = vmatpush1.xpose.msra.mxu0 0.0
        %1203 = vmatprep.subr.mxu0 0.0
        %1204 = vmatpush1.xpose.msra.mxu0 0.0
        %1205 = vmatprep.subr.mxu0 0.0
        %1206 = vmatpush1.xpose.msra.mxu0 0.0
        %1207 = vmatprep.subr.mxu0 0.0
        %1208 = vmatpush1.xpose.msra.mxu0 0.0
        %1209 = vmatprep.subr.mxu0 0.0
        %1210 = vmatpush1.xpose.msra.mxu0 0.0
        %1211 = vmatprep.mubr.f32.mxu0 0.0
        %1212 = vmatmul.mubr.f32.gmra.mrb[0].mxu0 %v1142
        %v1213 = vpop.f32.mrb[0].mxu0
        %v1214 = vadd.f32 0.0, %v1213
        %v1215 = vpop.f32.mrb[0].mxu0
        %1216 = vdwg.mxu0
        %v1218 = vsel %vm1140, %v836, 0
        %v1221 = vsel %vm1140, %v991, 0
        %1223 = vmatprep.subr.mxu0 0.0
        %1224 = vmatpush1.xpose.msra.mxu0 %v1221
        %1225 = vmatprep.subr.mxu0 0.0
        %1226 = vmatpush1.xpose.msra.mxu0 0.0
        %1227 = vmatprep.subr.mxu0 0.0
        %1228 = vmatpush1.xpose.msra.mxu0 0.0
        %1229 = vmatprep.subr.mxu0 0.0
        %1230 = vmatpush1.xpose.msra.mxu0 0.0
        %1231 = vmatprep.subr.mxu0 0.0
        %1232 = vmatpush1.xpose.msra.mxu0 0.0
        %1233 = vmatprep.subr.mxu0 0.0
        %1234 = vmatpush1.xpose.msra.mxu0 0.0
        %1235 = vmatprep.subr.mxu0 0.0
        %1236 = vmatpush1.xpose.msra.mxu0 0.0
        %1237 = vmatprep.subr.mxu0 0.0
        %1238 = vmatpush1.xpose.msra.mxu0 0.0
        %1239 = vmatprep.subr.mxu0 0.0
        %1240 = vmatpush1.xpose.msra.mxu0 0.0
        %1241 = vmatprep.subr.mxu0 0.0
        %1242 = vmatpush1.xpose.msra.mxu0 0.0
        %1243 = vmatprep.subr.mxu0 0.0
        %1244 = vmatpush1.xpose.msra.mxu0 0.0
        %1245 = vmatprep.subr.mxu0 0.0
        %1246 = vmatpush1.xpose.msra.mxu0 0.0
        %1247 = vmatprep.subr.mxu0 0.0
        %1248 = vmatpush1.xpose.msra.mxu0 0.0
        %1249 = vmatprep.subr.mxu0 0.0
        %1250 = vmatpush1.xpose.msra.mxu0 0.0
        %1251 = vmatprep.subr.mxu0 0.0
        %1252 = vmatpush1.xpose.msra.mxu0 0.0
        %1253 = vmatprep.subr.mxu0 0.0
        %1254 = vmatpush1.xpose.msra.mxu0 0.0
        %1255 = vmatprep.subr.mxu0 0.0
        %1256 = vmatpush1.xpose.msra.mxu0 0.0
        %1257 = vmatprep.subr.mxu0 0.0
        %1258 = vmatpush1.xpose.msra.mxu0 0.0
        %1259 = vmatprep.subr.mxu0 0.0
        %1260 = vmatpush1.xpose.msra.mxu0 0.0
        %1261 = vmatprep.subr.mxu0 0.0
        %1262 = vmatpush1.xpose.msra.mxu0 0.0
        %1263 = vmatprep.subr.mxu0 0.0
        %1264 = vmatpush1.xpose.msra.mxu0 0.0
        %1265 = vmatprep.subr.mxu0 0.0
        %1266 = vmatpush1.xpose.msra.mxu0 0.0
        %1267 = vmatprep.subr.mxu0 0.0
        %1268 = vmatpush1.xpose.msra.mxu0 0.0
        %1269 = vmatprep.subr.mxu0 0.0
        %1270 = vmatpush1.xpose.msra.mxu0 0.0
        %1271 = vmatprep.subr.mxu0 0.0
        %1272 = vmatpush1.xpose.msra.mxu0 0.0
        %1273 = vmatprep.subr.mxu0 0.0
        %1274 = vmatpush1.xpose.msra.mxu0 0.0
        %1275 = vmatprep.subr.mxu0 0.0
        %1276 = vmatpush1.xpose.msra.mxu0 0.0
        %1277 = vmatprep.subr.mxu0 0.0
        %1278 = vmatpush1.xpose.msra.mxu0 0.0
        %1279 = vmatprep.subr.mxu0 0.0
        %1280 = vmatpush1.xpose.msra.mxu0 0.0
        %1281 = vmatprep.subr.mxu0 0.0
        %1282 = vmatpush1.xpose.msra.mxu0 0.0
        %1283 = vmatprep.subr.mxu0 0.0
        %1284 = vmatpush1.xpose.msra.mxu0 0.0
        %1285 = vmatprep.subr.mxu0 0.0
        %1286 = vmatpush1.xpose.msra.mxu0 0.0
        %1287 = vmatprep.mubr.f32.mxu0 0.0
        %1288 = vmatmul.mubr.f32.gmra.mrb[0].mxu0 %v1218
        %v1289 = vpop.f32.mrb[0].mxu0
        %v1290 = vadd.f32 0.0, %v1289
        %v1291 = vpop.f32.mrb[0].mxu0
        %1292 = vdwg.mxu0
        %v1294 = vsel %vm1140, %v837, 0
        %v1297 = vsel %vm1140, %v992, 0
        %1299 = vmatprep.subr.mxu0 0.0
        %1300 = vmatpush1.xpose.msra.mxu0 %v1297
        %1301 = vmatprep.subr.mxu0 0.0
        %1302 = vmatpush1.xpose.msra.mxu0 0.0
        %1303 = vmatprep.subr.mxu0 0.0
        %1304 = vmatpush1.xpose.msra.mxu0 0.0
        %1305 = vmatprep.subr.mxu0 0.0
        %1306 = vmatpush1.xpose.msra.mxu0 0.0
        %1307 = vmatprep.subr.mxu0 0.0
        %1308 = vmatpush1.xpose.msra.mxu0 0.0
        %1309 = vmatprep.subr.mxu0 0.0
        %1310 = vmatpush1.xpose.msra.mxu0 0.0
        %1311 = vmatprep.subr.mxu0 0.0
        %1312 = vmatpush1.xpose.msra.mxu0 0.0
        %1313 = vmatprep.subr.mxu0 0.0
        %1314 = vmatpush1.xpose.msra.mxu0 0.0
        %1315 = vmatprep.subr.mxu0 0.0
        %1316 = vmatpush1.xpose.msra.mxu0 0.0
        %1317 = vmatprep.subr.mxu0 0.0
        %1318 = vmatpush1.xpose.msra.mxu0 0.0
        %1319 = vmatprep.subr.mxu0 0.0
        %1320 = vmatpush1.xpose.msra.mxu0 0.0
        %1321 = vmatprep.subr.mxu0 0.0
        %1322 = vmatpush1.xpose.msra.mxu0 0.0
        %1323 = vmatprep.subr.mxu0 0.0
        %1324 = vmatpush1.xpose.msra.mxu0 0.0
        %1325 = vmatprep.subr.mxu0 0.0
        %1326 = vmatpush1.xpose.msra.mxu0 0.0
        %1327 = vmatprep.subr.mxu0 0.0
        %1328 = vmatpush1.xpose.msra.mxu0 0.0
        %1329 = vmatprep.subr.mxu0 0.0
        %1330 = vmatpush1.xpose.msra.mxu0 0.0
        %1331 = vmatprep.subr.mxu0 0.0
        %1332 = vmatpush1.xpose.msra.mxu0 0.0
        %1333 = vmatprep.subr.mxu0 0.0
        %1334 = vmatpush1.xpose.msra.mxu0 0.0
        %1335 = vmatprep.subr.mxu0 0.0
        %1336 = vmatpush1.xpose.msra.mxu0 0.0
        %1337 = vmatprep.subr.mxu0 0.0
        %1338 = vmatpush1.xpose.msra.mxu0 0.0
        %1339 = vmatprep.subr.mxu0 0.0
        %1340 = vmatpush1.xpose.msra.mxu0 0.0
        %1341 = vmatprep.subr.mxu0 0.0
        %1342 = vmatpush1.xpose.msra.mxu0 0.0
        %1343 = vmatprep.subr.mxu0 0.0
        %1344 = vmatpush1.xpose.msra.mxu0 0.0
        %1345 = vmatprep.subr.mxu0 0.0
        %1346 = vmatpush1.xpose.msra.mxu0 0.0
        %1347 = vmatprep.subr.mxu0 0.0
        %1348 = vmatpush1.xpose.msra.mxu0 0.0
        %1349 = vmatprep.subr.mxu0 0.0
        %1350 = vmatpush1.xpose.msra.mxu0 0.0
        %1351 = vmatprep.subr.mxu0 0.0
        %1352 = vmatpush1.xpose.msra.mxu0 0.0
        %1353 = vmatprep.subr.mxu0 0.0
        %1354 = vmatpush1.xpose.msra.mxu0 0.0
        %1355 = vmatprep.subr.mxu0 0.0
        %1356 = vmatpush1.xpose.msra.mxu0 0.0
        %1357 = vmatprep.subr.mxu0 0.0
        %1358 = vmatpush1.xpose.msra.mxu0 0.0
        %1359 = vmatprep.subr.mxu0 0.0
        %1360 = vmatpush1.xpose.msra.mxu0 0.0
        %1361 = vmatprep.subr.mxu0 0.0
        %1362 = vmatpush1.xpose.msra.mxu0 0.0
        %1363 = vmatprep.mubr.f32.mxu0 0.0
        %1364 = vmatmul.mubr.f32.gmra.mrb[0].mxu0 %v1294
        %v1365 = vpop.f32.mrb[0].mxu0
        %v1366 = vadd.f32 0.0, %v1365
        %v1367 = vpop.f32.mrb[0].mxu0
        %1368 = vdwg.mxu0
        %v1370 = vsel %vm1140, %v838, 0
        %v1373 = vsel %vm1140, %v993, 0
        %1375 = vmatprep.subr.mxu0 0.0
        %1376 = vmatpush1.xpose.msra.mxu0 %v1373
        %1377 = vmatprep.subr.mxu0 0.0
        %1378 = vmatpush1.xpose.msra.mxu0 0.0
        %1379 = vmatprep.subr.mxu0 0.0
        %1380 = vmatpush1.xpose.msra.mxu0 0.0
        %1381 = vmatprep.subr.mxu0 0.0
        %1382 = vmatpush1.xpose.msra.mxu0 0.0
        %1383 = vmatprep.subr.mxu0 0.0
        %1384 = vmatpush1.xpose.msra.mxu0 0.0
        %1385 = vmatprep.subr.mxu0 0.0
        %1386 = vmatpush1.xpose.msra.mxu0 0.0
        %1387 = vmatprep.subr.mxu0 0.0
        %1388 = vmatpush1.xpose.msra.mxu0 0.0
        %1389 = vmatprep.subr.mxu0 0.0
        %1390 = vmatpush1.xpose.msra.mxu0 0.0
        %1391 = vmatprep.subr.mxu0 0.0
        %1392 = vmatpush1.xpose.msra.mxu0 0.0
        %1393 = vmatprep.subr.mxu0 0.0
        %1394 = vmatpush1.xpose.msra.mxu0 0.0
        %1395 = vmatprep.subr.mxu0 0.0
        %1396 = vmatpush1.xpose.msra.mxu0 0.0
        %1397 = vmatprep.subr.mxu0 0.0
        %1398 = vmatpush1.xpose.msra.mxu0 0.0
        %1399 = vmatprep.subr.mxu0 0.0
        %1400 = vmatpush1.xpose.msra.mxu0 0.0
        %1401 = vmatprep.subr.mxu0 0.0
        %1402 = vmatpush1.xpose.msra.mxu0 0.0
        %1403 = vmatprep.subr.mxu0 0.0
        %1404 = vmatpush1.xpose.msra.mxu0 0.0
        %1405 = vmatprep.subr.mxu0 0.0
        %1406 = vmatpush1.xpose.msra.mxu0 0.0
        %1407 = vmatprep.subr.mxu0 0.0
        %1408 = vmatpush1.xpose.msra.mxu0 0.0
        %1409 = vmatprep.subr.mxu0 0.0
        %1410 = vmatpush1.xpose.msra.mxu0 0.0
        %1411 = vmatprep.subr.mxu0 0.0
        %1412 = vmatpush1.xpose.msra.mxu0 0.0
        %1413 = vmatprep.subr.mxu0 0.0
        %1414 = vmatpush1.xpose.msra.mxu0 0.0
        %1415 = vmatprep.subr.mxu0 0.0
        %1416 = vmatpush1.xpose.msra.mxu0 0.0
        %1417 = vmatprep.subr.mxu0 0.0
        %1418 = vmatpush1.xpose.msra.mxu0 0.0
        %1419 = vmatprep.subr.mxu0 0.0
        %1420 = vmatpush1.xpose.msra.mxu0 0.0
        %1421 = vmatprep.subr.mxu0 0.0
        %1422 = vmatpush1.xpose.msra.mxu0 0.0
        %1423 = vmatprep.subr.mxu0 0.0
        %1424 = vmatpush1.xpose.msra.mxu0 0.0
        %1425 = vmatprep.subr.mxu0 0.0
        %1426 = vmatpush1.xpose.msra.mxu0 0.0
        %1427 = vmatprep.subr.mxu0 0.0
        %1428 = vmatpush1.xpose.msra.mxu0 0.0
        %1429 = vmatprep.subr.mxu0 0.0
        %1430 = vmatpush1.xpose.msra.mxu0 0.0
        %1431 = vmatprep.subr.mxu0 0.0
        %1432 = vmatpush1.xpose.msra.mxu0 0.0
        %1433 = vmatprep.subr.mxu0 0.0
        %1434 = vmatpush1.xpose.msra.mxu0 0.0
        %1435 = vmatprep.subr.mxu0 0.0
        %1436 = vmatpush1.xpose.msra.mxu0 0.0
        %1437 = vmatprep.subr.mxu0 0.0
        %1438 = vmatpush1.xpose.msra.mxu0 0.0
        %1439 = vmatprep.mubr.f32.mxu0 0.0
        %1440 = vmatmul.mubr.f32.gmra.mrb[0].mxu0 %v1370
        %v1441 = vpop.f32.mrb[0].mxu0
        %v1442 = vadd.f32 0.0, %v1441
        %v1443 = vpop.f32.mrb[0].mxu0
        %1444 = vdwg.mxu0
        %vm1445 = vcmask 64512
        %v1446 = vsel %vm1445, %v1214, -inf
        %1447 = vmax.xlane.f32.xlu0 %v1446
        %v1448 = vpop.xlane.xlu0 %1447
        %v1449 = vsel %vm1445, %v1290, -inf
        %1450 = vmax.xlane.f32.xlu0 %v1449
        %v1451 = vpop.xlane.xlu0 %1450
        %v1452 = vsel %vm1445, %v1366, -inf
        %1453 = vmax.xlane.f32.xlu0 %v1452
        %v1454 = vpop.xlane.xlu0 %1453
        %v1455 = vsel %vm1445, %v1442, -inf
        %1456 = vmax.xlane.f32.xlu0 %v1455
        %v1457 = vpop.xlane.xlu0 %1456
        %v1458 = vsub.f32 %v1214, %v1448
        %v1459 = vsub.f32 %v1290, %v1451
        %v1460 = vsub.f32 %v1366, %v1454
        %v1461 = vsub.f32 %v1442, %v1457
        %v1462 = vmul.f32 %v1458, 1.442695
        %v1463 = vpow.pop %v1462
        %v1464 = vmul.f32 %v1459, 1.442695
        %v1465 = vpow.pop %v1464
        %v1466 = vmul.f32 %v1460, 1.442695
        %v1467 = vpow.pop %v1466
        %v1468 = vmul.f32 %v1461, 1.442695
        %v1469 = vpow.pop %v1468
        %v1470 = vsel %vm1445, %v1463, 0.0
        %1471 = vadd.xlane.f32.xlu0 %v1470
        %v1472 = vpop.xlane.xlu0 %1471
        %v1473 = vsel %vm1445, %v1465, 0.0
        %1474 = vadd.xlane.f32.xlu0 %v1473
        %v1475 = vpop.xlane.xlu0 %1474
        %v1476 = vsel %vm1445, %v1467, 0.0
        %1477 = vadd.xlane.f32.xlu0 %v1476
        %v1478 = vpop.xlane.xlu0 %1477
        %v1479 = vsel %vm1445, %v1469, 0.0
        %1480 = vadd.xlane.f32.xlu0 %v1479
        %v1481 = vpop.xlane.xlu0 %1480
        %v1482 = vrcp.pop %v1472
        %v1483 = vmul.f32 %v1463, %v1482
        %v1484 = vrcp.pop %v1475
        %v1485 = vmul.f32 %v1465, %v1484
        %v1486 = vrcp.pop %v1478
        %v1487 = vmul.f32 %v1467, %v1486
        %v1488 = vrcp.pop %v1481
        %v1489 = vmul.f32 %v1469, %v1488
        %v1491 = vsel %vm1445, %v1483, 0
        %1493 = vmatprep.subr.mxu0 0.0
        %1494 = vmatpush1.msra.mxu0 %v1136
        %1495 = vmatprep.subr.mxu0 0.0
        %1496 = vmatpush1.msra.mxu0 0.0
        %1497 = vmatprep.subr.mxu0 0.0
        %1498 = vmatpush1.msra.mxu0 0.0
        %1499 = vmatprep.subr.mxu0 0.0
        %1500 = vmatpush1.msra.mxu0 0.0
        %1501 = vmatprep.subr.mxu0 0.0
        %1502 = vmatpush1.msra.mxu0 0.0
        %1503 = vmatprep.subr.mxu0 0.0
        %1504 = vmatpush1.msra.mxu0 0.0
        %1505 = vmatprep.subr.mxu0 0.0
        %1506 = vmatpush1.msra.mxu0 0.0
        %1507 = vmatprep.subr.mxu0 0.0
        %1508 = vmatpush1.msra.mxu0 0.0
        %1509 = vmatprep.subr.mxu0 0.0
        %1510 = vmatpush1.msra.mxu0 0.0
        %1511 = vmatprep.subr.mxu0 0.0
        %1512 = vmatpush1.msra.mxu0 0.0
        %1513 = vmatprep.subr.mxu0 0.0
        %1514 = vmatpush1.msra.mxu0 0.0
        %1515 = vmatprep.subr.mxu0 0.0
        %1516 = vmatpush1.msra.mxu0 0.0
        %1517 = vmatprep.subr.mxu0 0.0
        %1518 = vmatpush1.msra.mxu0 0.0
        %1519 = vmatprep.subr.mxu0 0.0
        %1520 = vmatpush1.msra.mxu0 0.0
        %1521 = vmatprep.subr.mxu0 0.0
        %1522 = vmatpush1.msra.mxu0 0.0
        %1523 = vmatprep.subr.mxu0 0.0
        %1524 = vmatpush1.msra.mxu0 0.0
        %1525 = vmatprep.subr.mxu0 0.0
        %1526 = vmatpush1.msra.mxu0 0.0
        %1527 = vmatprep.subr.mxu0 0.0
        %1528 = vmatpush1.msra.mxu0 0.0
        %1529 = vmatprep.subr.mxu0 0.0
        %1530 = vmatpush1.msra.mxu0 0.0
        %1531 = vmatprep.subr.mxu0 0.0
        %1532 = vmatpush1.msra.mxu0 0.0
        %1533 = vmatprep.subr.mxu0 0.0
        %1534 = vmatpush1.msra.mxu0 0.0
        %1535 = vmatprep.subr.mxu0 0.0
        %1536 = vmatpush1.msra.mxu0 0.0
        %1537 = vmatprep.subr.mxu0 0.0
        %1538 = vmatpush1.msra.mxu0 0.0
        %1539 = vmatprep.subr.mxu0 0.0
        %1540 = vmatpush1.msra.mxu0 0.0
        %1541 = vmatprep.subr.mxu0 0.0
        %1542 = vmatpush1.msra.mxu0 0.0
        %1543 = vmatprep.subr.mxu0 0.0
        %1544 = vmatpush1.msra.mxu0 0.0
        %1545 = vmatprep.subr.mxu0 0.0
        %1546 = vmatpush1.msra.mxu0 0.0
        %1547 = vmatprep.subr.mxu0 0.0
        %1548 = vmatpush1.msra.mxu0 0.0
        %1549 = vmatprep.subr.mxu0 0.0
        %1550 = vmatpush1.msra.mxu0 0.0
        %1551 = vmatprep.subr.mxu0 0.0
        %1552 = vmatpush1.msra.mxu0 0.0
        %1553 = vmatprep.subr.mxu0 0.0
        %1554 = vmatpush1.msra.mxu0 0.0
        %1555 = vmatprep.subr.mxu0 0.0
        %1556 = vmatpush1.msra.mxu0 0.0
        %1557 = vmatprep.mubr.f32.mxu0 0.0
        %1558 = vmatmul.mubr.f32.gmra.mrb[0].mxu0 %v1491
        %v1559 = vpop.f32.mrb[0].mxu0
        %v1560 = vadd.f32 0.0, %v1559
        %v1561 = vpop.f32.mrb[0].mxu0
        %1562 = vdwg.mxu0
        %v1564 = vsel %vm1445, %v1485, 0
        %1566 = vmatprep.subr.mxu0 0.0
        %1567 = vmatpush1.msra.mxu0 %v1137
        %1568 = vmatprep.subr.mxu0 0.0
        %1569 = vmatpush1.msra.mxu0 0.0
        %1570 = vmatprep.subr.mxu0 0.0
        %1571 = vmatpush1.msra.mxu0 0.0
        %1572 = vmatprep.subr.mxu0 0.0
        %1573 = vmatpush1.msra.mxu0 0.0
        %1574 = vmatprep.subr.mxu0 0.0
        %1575 = vmatpush1.msra.mxu0 0.0
        %1576 = vmatprep.subr.mxu0 0.0
        %1577 = vmatpush1.msra.mxu0 0.0
        %1578 = vmatprep.subr.mxu0 0.0
        %1579 = vmatpush1.msra.mxu0 0.0
        %1580 = vmatprep.subr.mxu0 0.0
        %1581 = vmatpush1.msra.mxu0 0.0
        %1582 = vmatprep.subr.mxu0 0.0
        %1583 = vmatpush1.msra.mxu0 0.0
        %1584 = vmatprep.subr.mxu0 0.0
        %1585 = vmatpush1.msra.mxu0 0.0
        %1586 = vmatprep.subr.mxu0 0.0
        %1587 = vmatpush1.msra.mxu0 0.0
        %1588 = vmatprep.subr.mxu0 0.0
        %1589 = vmatpush1.msra.mxu0 0.0
        %1590 = vmatprep.subr.mxu0 0.0
        %1591 = vmatpush1.msra.mxu0 0.0
        %1592 = vmatprep.subr.mxu0 0.0
        %1593 = vmatpush1.msra.mxu0 0.0
        %1594 = vmatprep.subr.mxu0 0.0
        %1595 = vmatpush1.msra.mxu0 0.0
        %1596 = vmatprep.subr.mxu0 0.0
        %1597 = vmatpush1.msra.mxu0 0.0
        %1598 = vmatprep.subr.mxu0 0.0
        %1599 = vmatpush1.msra.mxu0 0.0
        %1600 = vmatprep.subr.mxu0 0.0
        %1601 = vmatpush1.msra.mxu0 0.0
        %1602 = vmatprep.subr.mxu0 0.0
        %1603 = vmatpush1.msra.mxu0 0.0
        %1604 = vmatprep.subr.mxu0 0.0
        %1605 = vmatpush1.msra.mxu0 0.0
        %1606 = vmatprep.subr.mxu0 0.0
        %1607 = vmatpush1.msra.mxu0 0.0
        %1608 = vmatprep.subr.mxu0 0.0
        %1609 = vmatpush1.msra.mxu0 0.0
        %1610 = vmatprep.subr.mxu0 0.0
        %1611 = vmatpush1.msra.mxu0 0.0
        %1612 = vmatprep.subr.mxu0 0.0
        %1613 = vmatpush1.msra.mxu0 0.0
        %1614 = vmatprep.subr.mxu0 0.0
        %1615 = vmatpush1.msra.mxu0 0.0
        %1616 = vmatprep.subr.mxu0 0.0
        %1617 = vmatpush1.msra.mxu0 0.0
        %1618 = vmatprep.subr.mxu0 0.0
        %1619 = vmatpush1.msra.mxu0 0.0
        %1620 = vmatprep.subr.mxu0 0.0
        %1621 = vmatpush1.msra.mxu0 0.0
        %1622 = vmatprep.subr.mxu0 0.0
        %1623 = vmatpush1.msra.mxu0 0.0
        %1624 = vmatprep.subr.mxu0 0.0
        %1625 = vmatpush1.msra.mxu0 0.0
        %1626 = vmatprep.subr.mxu0 0.0
        %1627 = vmatpush1.msra.mxu0 0.0
        %1628 = vmatprep.subr.mxu0 0.0
        %1629 = vmatpush1.msra.mxu0 0.0
        %1630 = vmatprep.mubr.f32.mxu0 0.0
        %1631 = vmatmul.mubr.f32.gmra.mrb[0].mxu0 %v1564
        %v1632 = vpop.f32.mrb[0].mxu0
        %v1633 = vadd.f32 0.0, %v1632
        %v1634 = vpop.f32.mrb[0].mxu0
        %1635 = vdwg.mxu0
        %v1637 = vsel %vm1445, %v1487, 0
        %1639 = vmatprep.subr.mxu0 0.0
        %1640 = vmatpush1.msra.mxu0 %v1138
        %1641 = vmatprep.subr.mxu0 0.0
        %1642 = vmatpush1.msra.mxu0 0.0
        %1643 = vmatprep.subr.mxu0 0.0
        %1644 = vmatpush1.msra.mxu0 0.0
        %1645 = vmatprep.subr.mxu0 0.0
        %1646 = vmatpush1.msra.mxu0 0.0
        %1647 = vmatprep.subr.mxu0 0.0
        %1648 = vmatpush1.msra.mxu0 0.0
        %1649 = vmatprep.subr.mxu0 0.0
        %1650 = vmatpush1.msra.mxu0 0.0
        %1651 = vmatprep.subr.mxu0 0.0
        %1652 = vmatpush1.msra.mxu0 0.0
        %1653 = vmatprep.subr.mxu0 0.0
        %1654 = vmatpush1.msra.mxu0 0.0
        %1655 = vmatprep.subr.mxu0 0.0
        %1656 = vmatpush1.msra.mxu0 0.0
        %1657 = vmatprep.subr.mxu0 0.0
        %1658 = vmatpush1.msra.mxu0 0.0
        %1659 = vmatprep.subr.mxu0 0.0
        %1660 = vmatpush1.msra.mxu0 0.0
        %1661 = vmatprep.subr.mxu0 0.0
        %1662 = vmatpush1.msra.mxu0 0.0
        %1663 = vmatprep.subr.mxu0 0.0
        %1664 = vmatpush1.msra.mxu0 0.0
        %1665 = vmatprep.subr.mxu0 0.0
        %1666 = vmatpush1.msra.mxu0 0.0
        %1667 = vmatprep.subr.mxu0 0.0
        %1668 = vmatpush1.msra.mxu0 0.0
        %1669 = vmatprep.subr.mxu0 0.0
        %1670 = vmatpush1.msra.mxu0 0.0
        %1671 = vmatprep.subr.mxu0 0.0
        %1672 = vmatpush1.msra.mxu0 0.0
        %1673 = vmatprep.subr.mxu0 0.0
        %1674 = vmatpush1.msra.mxu0 0.0
        %1675 = vmatprep.subr.mxu0 0.0
        %1676 = vmatpush1.msra.mxu0 0.0
        %1677 = vmatprep.subr.mxu0 0.0
        %1678 = vmatpush1.msra.mxu0 0.0
        %1679 = vmatprep.subr.mxu0 0.0
        %1680 = vmatpush1.msra.mxu0 0.0
        %1681 = vmatprep.subr.mxu0 0.0
        %1682 = vmatpush1.msra.mxu0 0.0
        %1683 = vmatprep.subr.mxu0 0.0
        %1684 = vmatpush1.msra.mxu0 0.0
        %1685 = vmatprep.subr.mxu0 0.0
        %1686 = vmatpush1.msra.mxu0 0.0
        %1687 = vmatprep.subr.mxu0 0.0
        %1688 = vmatpush1.msra.mxu0 0.0
        %1689 = vmatprep.subr.mxu0 0.0
        %1690 = vmatpush1.msra.mxu0 0.0
        %1691 = vmatprep.subr.mxu0 0.0
        %1692 = vmatpush1.msra.mxu0 0.0
        %1693 = vmatprep.subr.mxu0 0.0
        %1694 = vmatpush1.msra.mxu0 0.0
        %1695 = vmatprep.subr.mxu0 0.0
        %1696 = vmatpush1.msra.mxu0 0.0
        %1697 = vmatprep.subr.mxu0 0.0
        %1698 = vmatpush1.msra.mxu0 0.0
        %1699 = vmatprep.subr.mxu0 0.0
        %1700 = vmatpush1.msra.mxu0 0.0
        %1701 = vmatprep.subr.mxu0 0.0
        %1702 = vmatpush1.msra.mxu0 0.0
        %1703 = vmatprep.mubr.f32.mxu0 0.0
        %1704 = vmatmul.mubr.f32.gmra.mrb[0].mxu0 %v1637
        %v1705 = vpop.f32.mrb[0].mxu0
        %v1706 = vadd.f32 0.0, %v1705
        %v1707 = vpop.f32.mrb[0].mxu0
        %1708 = vdwg.mxu0
        %v1710 = vsel %vm1445, %v1489, 0
        %1712 = vmatprep.subr.mxu0 0.0
        %1713 = vmatpush1.msra.mxu0 %v1139
        %1714 = vmatprep.subr.mxu0 0.0
        %1715 = vmatpush1.msra.mxu0 0.0
        %1716 = vmatprep.subr.mxu0 0.0
        %1717 = vmatpush1.msra.mxu0 0.0
        %1718 = vmatprep.subr.mxu0 0.0
        %1719 = vmatpush1.msra.mxu0 0.0
        %1720 = vmatprep.subr.mxu0 0.0
        %1721 = vmatpush1.msra.mxu0 0.0
        %1722 = vmatprep.subr.mxu0 0.0
        %1723 = vmatpush1.msra.mxu0 0.0
        %1724 = vmatprep.subr.mxu0 0.0
        %1725 = vmatpush1.msra.mxu0 0.0
        %1726 = vmatprep.subr.mxu0 0.0
        %1727 = vmatpush1.msra.mxu0 0.0
        %1728 = vmatprep.subr.mxu0 0.0
        %1729 = vmatpush1.msra.mxu0 0.0
        %1730 = vmatprep.subr.mxu0 0.0
        %1731 = vmatpush1.msra.mxu0 0.0
        %1732 = vmatprep.subr.mxu0 0.0
        %1733 = vmatpush1.msra.mxu0 0.0
        %1734 = vmatprep.subr.mxu0 0.0
        %1735 = vmatpush1.msra.mxu0 0.0
        %1736 = vmatprep.subr.mxu0 0.0
        %1737 = vmatpush1.msra.mxu0 0.0
        %1738 = vmatprep.subr.mxu0 0.0
        %1739 = vmatpush1.msra.mxu0 0.0
        %1740 = vmatprep.subr.mxu0 0.0
        %1741 = vmatpush1.msra.mxu0 0.0
        %1742 = vmatprep.subr.mxu0 0.0
        %1743 = vmatpush1.msra.mxu0 0.0
        %1744 = vmatprep.subr.mxu0 0.0
        %1745 = vmatpush1.msra.mxu0 0.0
        %1746 = vmatprep.subr.mxu0 0.0
        %1747 = vmatpush1.msra.mxu0 0.0
        %1748 = vmatprep.subr.mxu0 0.0
        %1749 = vmatpush1.msra.mxu0 0.0
        %1750 = vmatprep.subr.mxu0 0.0
        %1751 = vmatpush1.msra.mxu0 0.0
        %1752 = vmatprep.subr.mxu0 0.0
        %1753 = vmatpush1.msra.mxu0 0.0
        %1754 = vmatprep.subr.mxu0 0.0
        %1755 = vmatpush1.msra.mxu0 0.0
        %1756 = vmatprep.subr.mxu0 0.0
        %1757 = vmatpush1.msra.mxu0 0.0
        %1758 = vmatprep.subr.mxu0 0.0
        %1759 = vmatpush1.msra.mxu0 0.0
        %1760 = vmatprep.subr.mxu0 0.0
        %1761 = vmatpush1.msra.mxu0 0.0
        %1762 = vmatprep.subr.mxu0 0.0
        %1763 = vmatpush1.msra.mxu0 0.0
        %1764 = vmatprep.subr.mxu0 0.0
        %1765 = vmatpush1.msra.mxu0 0.0
        %1766 = vmatprep.subr.mxu0 0.0
        %1767 = vmatpush1.msra.mxu0 0.0
        %1768 = vmatprep.subr.mxu0 0.0
        %1769 = vmatpush1.msra.mxu0 0.0
        %1770 = vmatprep.subr.mxu0 0.0
        %1771 = vmatpush1.msra.mxu0 0.0
        %1772 = vmatprep.subr.mxu0 0.0
        %1773 = vmatpush1.msra.mxu0 0.0
        %1774 = vmatprep.subr.mxu0 0.0
        %1775 = vmatpush1.msra.mxu0 0.0
        %1776 = vmatprep.mubr.f32.mxu0 0.0
        %1777 = vmatmul.mubr.f32.gmra.mrb[0].mxu0 %v1710
        %v1778 = vpop.f32.mrb[0].mxu0
        %v1779 = vadd.f32 0.0, %v1778
        %v1780 = vpop.f32.mrb[0].mxu0
        %1781 = vdwg.mxu0
        %v1782 = vcombine.low %v1560, %v1706
        %v1783 = vcombine.high %v1560, %v1706
        %v1785 = vunpack.c.l.s4 1983009808
        %v1786 = vunpack.c.0.s8 %v1785
        %v1787 = vlaneseq
        %v1788 = vshrl.u32 %v1787, 7
        %v1789 = vsub.s32 %v1786, %v1788
        %v1790 = vrot.slane %v1782, %v1789
        %v1792 = vunpack.c.l.s4 1983009808
        %v1793 = vunpack.c.0.s8 %v1792
        %v1794 = vlaneseq
        %v1795 = vshrl.u32 %v1794, 7
        %v1796 = vsub.s32 %v1793, %v1795
        %v1797 = vrot.slane %v1783, %v1796
        %v1798 = vcombine.low %v1633, %v1779
        %v1799 = vcombine.high %v1633, %v1779
        %v1801 = vunpack.c.l.s4 1983009808
        %v1802 = vunpack.c.0.s8 %v1801
        %v1803 = vlaneseq
        %v1804 = vshrl.u32 %v1803, 7
        %v1805 = vsub.s32 %v1802, %v1804
        %v1806 = vrot.slane %v1798, %v1805
        %v1808 = vunpack.c.l.s4 1983009808
        %v1809 = vunpack.c.0.s8 %v1808
        %v1810 = vlaneseq
        %v1811 = vshrl.u32 %v1810, 7
        %v1812 = vsub.s32 %v1809, %v1811
        %v1813 = vrot.slane %v1799, %v1812
        %v1814 = vcombine.low %v1790, %v1806
        %v1815 = vcombine.high %v1790, %v1806
        %v1817 = vunpack.c.l.s4 1934713408
        %v1818 = vunpack.c.0.s8 %v1817
        %v1819 = vlaneseq
        %v1820 = vshrl.u32 %v1819, 7
        %v1821 = vsub.s32 %v1818, %v1820
        %v1822 = vrot.slane %v1814, %v1821
        %v1824 = vunpack.c.l.s4 1934713408
        %v1825 = vunpack.c.0.s8 %v1824
        %v1826 = vlaneseq
        %v1827 = vshrl.u32 %v1826, 7
        %v1828 = vsub.s32 %v1825, %v1827
        %v1829 = vrot.slane %v1815, %v1828
        %v1830 = vcombine.low %v1797, %v1813
        %v1831 = vcombine.high %v1797, %v1813
        %v1833 = vunpack.c.l.s4 1934713408
        %v1834 = vunpack.c.0.s8 %v1833
        %v1835 = vlaneseq
        %v1836 = vshrl.u32 %v1835, 7
        %v1837 = vsub.s32 %v1834, %v1836
        %v1838 = vrot.slane %v1830, %v1837
        %v1840 = vunpack.c.l.s4 1934713408
        %v1841 = vunpack.c.0.s8 %v1840
        %v1842 = vlaneseq
        %v1843 = vshrl.u32 %v1842, 7
        %v1844 = vsub.s32 %v1841, %v1843
        %v1845 = vrot.slane %v1831, %v1844
        %v1846 = vcombine.high %v1822, 0.0
        %v1847 = vcombine.high %v1829, 0.0
        %v1848 = vcombine.high %v1838, 0.0
        %v1849 = vcombine.high %v1845, 0.0
        %v1850 = vcombine.low %v1822, %v1829
        %v1852 = vunpack.c.l.s4 1983009808
        %v1853 = vunpack.c.0.s8 %v1852
        %v1854 = vlaneseq
        %v1855 = vshrl.u32 %v1854, 7
        %v1856 = vsub.s32 %v1853, %v1855
        %v1857 = vrot.slane %v1850, %v1856
        %v1858 = vcombine.low %v1846, %v1847
        %v1860 = vunpack.c.l.s4 1983009808
        %v1861 = vunpack.c.0.s8 %v1860
        %v1862 = vlaneseq
        %v1863 = vshrl.u32 %v1862, 7
        %v1864 = vsub.s32 %v1861, %v1863
        %v1865 = vrot.slane %v1858, %v1864
        %v1866 = vcombine.low %v1838, %v1845
        %v1868 = vunpack.c.l.s4 1983009808
        %v1869 = vunpack.c.0.s8 %v1868
        %v1870 = vlaneseq
        %v1871 = vshrl.u32 %v1870, 7
        %v1872 = vsub.s32 %v1869, %v1871
        %v1873 = vrot.slane %v1866, %v1872
        %v1874 = vcombine.low %v1848, %v1849
        %v1876 = vunpack.c.l.s4 1983009808
        %v1877 = vunpack.c.0.s8 %v1876
        %v1878 = vlaneseq
        %v1879 = vshrl.u32 %v1878, 7
        %v1880 = vsub.s32 %v1877, %v1879
        %v1881 = vrot.slane %v1874, %v1880
        %v1882 = vcombine.low %v1857, %v1865
        %v1883 = vcombine.high %v1857, %v1865
        %v1885 = vunpack.c.l.s4 1934713408
        %v1886 = vunpack.c.0.s8 %v1885
        %v1887 = vlaneseq
        %v1888 = vshrl.u32 %v1887, 7
        %v1889 = vsub.s32 %v1886, %v1888
        %v1890 = vrot.slane %v1882, %v1889
        %v1892 = vunpack.c.l.s4 1934713408
        %v1893 = vunpack.c.0.s8 %v1892
        %v1894 = vlaneseq
        %v1895 = vshrl.u32 %v1894, 7
        %v1896 = vsub.s32 %v1893, %v1895
        %v1897 = vrot.slane %v1883, %v1896
        %v1898 = vcombine.low %v1873, %v1881
        %v1899 = vcombine.high %v1873, %v1881
        %v1901 = vunpack.c.l.s4 1934713408
        %v1902 = vunpack.c.0.s8 %v1901
        %v1903 = vlaneseq
        %v1904 = vshrl.u32 %v1903, 7
        %v1905 = vsub.s32 %v1902, %v1904
        %v1906 = vrot.slane %v1898, %v1905
        %v1908 = vunpack.c.l.s4 1934713408
        %v1909 = vunpack.c.0.s8 %v1908
        %v1910 = vlaneseq
        %v1911 = vshrl.u32 %v1910, 7
        %v1912 = vsub.s32 %v1909, %v1911
        %v1913 = vrot.slane %v1899, %v1912
        %v1914 = vcombine.low %v1890, %v1906
        %v1915 = vcombine.high %v1890, %v1906
        %v1916 = vcombine.low %v1897, %v1913
        %v1917 = vcombine.high %v1897, %v1913
        %1919 = vrot.lane.b32.xlu0 %v1915, 16
        %v1920 = vpop.permute.xlu0 %1919
        %1923 = vrot.lane.b32.xlu0 %v1916, 32
        %v1924 = vpop.permute.xlu0 %1923
        %1927 = vrot.lane.b32.xlu0 %v1917, 48
        %v1928 = vpop.permute.xlu0 %1927
        %v1930 = vsel %vm1140, %v1914, %v1920
        %v1931 = vsel %vm578, %v1930, %v1924
        %vm1932 = vcmask 392192
        %v1933 = vsel %vm1932, %v1931, %v1928
        %v1934 = vld [vmem:[#allocation10] sm:$0xff]
        %v1935 = vld [vmem:[#allocation10 + $0x8] sm:$0xff]
        %v1936 = vld [vmem:[#allocation10 + $0x10] sm:$0xff]
        %v1937 = vld [vmem:[#allocation10 + $0x18] sm:$0xff]
        %v1938 = vld [vmem:[#allocation10 + $0x20] sm:$0xff]
        %v1939 = vld [vmem:[#allocation10 + $0x28] sm:$0xff]
        %v1940 = vld [vmem:[#allocation10 + $0x30] sm:$0xff]
        %v1941 = vld [vmem:[#allocation10 + $0x38] sm:$0xff]
        %v1942 = vld [vmem:[#allocation11] sm:$0x1]
        %v1944 = vlaneseq
        %v1945 = vshrl.u32 %v1944, 7
        %v1946 = vsub.s32 0, %v1945
        %v1947 = vrot.slane %v1942, %v1946
        %vm1949 = vcmask 523264
        %v1951 = vsel %vm1949, %v1933, 0
        %1953 = vmatprep.subr.mxu0 0.0
        %1954 = vmatpush1.msra.mxu0 %v1934
        %1955 = vmatprep.subr.mxu0 0.0
        %1956 = vmatpush1.msra.mxu0 %v1935
        %1957 = vmatprep.subr.mxu0 0.0
        %1958 = vmatpush1.msra.mxu0 %v1936
        %1959 = vmatprep.subr.mxu0 0.0
        %1960 = vmatpush1.msra.mxu0 %v1937
        %1961 = vmatprep.subr.mxu0 0.0
        %1962 = vmatpush1.msra.mxu0 %v1938
        %1963 = vmatprep.subr.mxu0 0.0
        %1964 = vmatpush1.msra.mxu0 %v1939
        %1965 = vmatprep.subr.mxu0 0.0
        %1966 = vmatpush1.msra.mxu0 %v1940
        %1967 = vmatprep.subr.mxu0 0.0
        %1968 = vmatpush1.msra.mxu0 %v1941
        %1969 = vmatprep.subr.mxu0 0.0
        %1970 = vmatpush1.msra.mxu0 0.0
        %1971 = vmatprep.subr.mxu0 0.0
        %1972 = vmatpush1.msra.mxu0 0.0
        %1973 = vmatprep.subr.mxu0 0.0
        %1974 = vmatpush1.msra.mxu0 0.0
        %1975 = vmatprep.subr.mxu0 0.0
        %1976 = vmatpush1.msra.mxu0 0.0
        %1977 = vmatprep.subr.mxu0 0.0
        %1978 = vmatpush1.msra.mxu0 0.0
        %1979 = vmatprep.subr.mxu0 0.0
        %1980 = vmatpush1.msra.mxu0 0.0
        %1981 = vmatprep.subr.mxu0 0.0
        %1982 = vmatpush1.msra.mxu0 0.0
        %1983 = vmatprep.subr.mxu0 0.0
        %1984 = vmatpush1.msra.mxu0 0.0
        %1985 = vmatprep.subr.mxu0 0.0
        %1986 = vmatpush1.msra.mxu0 0.0
        %1987 = vmatprep.subr.mxu0 0.0
        %1988 = vmatpush1.msra.mxu0 0.0
        %1989 = vmatprep.subr.mxu0 0.0
        %1990 = vmatpush1.msra.mxu0 0.0
        %1991 = vmatprep.subr.mxu0 0.0
        %1992 = vmatpush1.msra.mxu0 0.0
        %1993 = vmatprep.subr.mxu0 0.0
        %1994 = vmatpush1.msra.mxu0 0.0
        %1995 = vmatprep.subr.mxu0 0.0
        %1996 = vmatpush1.msra.mxu0 0.0
        %1997 = vmatprep.subr.mxu0 0.0
        %1998 = vmatpush1.msra.mxu0 0.0
        %1999 = vmatprep.subr.mxu0 0.0
        %2000 = vmatpush1.msra.mxu0 0.0
        %2001 = vmatprep.subr.mxu0 0.0
        %2002 = vmatpush1.msra.mxu0 0.0
        %2003 = vmatprep.subr.mxu0 0.0
        %2004 = vmatpush1.msra.mxu0 0.0
        %2005 = vmatprep.subr.mxu0 0.0
        %2006 = vmatpush1.msra.mxu0 0.0
        %2007 = vmatprep.subr.mxu0 0.0
        %2008 = vmatpush1.msra.mxu0 0.0
        %2009 = vmatprep.subr.mxu0 0.0
        %2010 = vmatpush1.msra.mxu0 0.0
        %2011 = vmatprep.subr.mxu0 0.0
        %2012 = vmatpush1.msra.mxu0 0.0
        %2013 = vmatprep.subr.mxu0 0.0
        %2014 = vmatpush1.msra.mxu0 0.0
        %2015 = vmatprep.subr.mxu0 0.0
        %2016 = vmatpush1.msra.mxu0 0.0
        %2017 = vmatprep.mubr.f32.mxu0 0.0
        %2018 = vmatmul.mubr.f32.gmra.mrb[0].mxu0 %v1951
        %v2019 = vpop.f32.mrb[0].mxu0
        %v2020 = vadd.f32 %v1947, %v2019
        %v2021 = vpop.f32.mrb[0].mxu0
        %2022 = vdwg.mxu0
        %v2023 = vld [vmem:[#allocation13] sm:$0x1]
        %v2024 = vld [vmem:[#allocation14] sm:$0x1]
        %v2025 = vsel %vm578, %v2020, 0.0
        %2026 = vadd.xlane.f32.xlu0 %v2025
        %v2027 = vpop.xlane.xlu0 %2026
        %v2028 = vmul.f32 %v2027, %v582
        %v2029 = vmul.f32 %v2020, %v2020
        %v2030 = vsel %vm578, %v2029, 0.0
        %2031 = vadd.xlane.f32.xlu0 %v2030
        %v2032 = vpop.xlane.xlu0 %2031
        %v2033 = vmul.f32 %v2032, %v582
        %v2034 = vmul.f32 %v2028, %v2028
        %v2035 = vsub.f32 %v2033, %v2034
        %v2036 = vmax.f32 %v2035, 0.0
        %v2037 = vsub.f32 %v2020, %v2028
        %v2038 = vadd.f32 %v2036, 1e-05
        %v2039 = vrsqrt.pop %v2038
        %v2040 = vmul.f32 %v2037, %v2039
        %v2042 = vlaneseq
        %v2043 = vshrl.u32 %v2042, 7
        %v2044 = vsub.s32 0, %v2043
        %v2045 = vrot.slane %v2023, %v2044
        %v2047 = vmul.f32 %v2040, %v2045
        %v2049 = vlaneseq
        %v2050 = vshrl.u32 %v2049, 7
        %v2051 = vsub.s32 0, %v2050
        %v2052 = vrot.slane %v2024, %v2051
        %v2054 = vadd.f32 %v2047, %v2052
        %v2055 = vld [vmem:[#allocation16] sm:$0xff]
        %v2056 = vld [vmem:[#allocation16 + $0x8] sm:$0xff]
        %v2057 = vld [vmem:[#allocation16 + $0x10] sm:$0xff]
        %v2058 = vld [vmem:[#allocation16 + $0x18] sm:$0xff]
        %v2059 = vld [vmem:[#allocation17] sm:$0x1]
        %v2061 = vlaneseq
        %v2062 = vshrl.u32 %v2061, 7
        %v2063 = vsub.s32 0, %v2062
        %v2064 = vrot.slane %v2059, %v2063
        %v2067 = vsel %vm578, %v2054, 0
        %2069 = vmatprep.subr.mxu0 0.0
        %2070 = vmatpush1.msra.mxu0 %v2055
        %2071 = vmatprep.subr.mxu0 0.0
        %2072 = vmatpush1.msra.mxu0 %v2056
        %2073 = vmatprep.subr.mxu0 0.0
        %2074 = vmatpush1.msra.mxu0 %v2057
        %2075 = vmatprep.subr.mxu0 0.0
        %2076 = vmatpush1.msra.mxu0 %v2058
        %2077 = vmatprep.subr.mxu0 0.0
        %2078 = vmatpush1.msra.mxu0 0.0
        %2079 = vmatprep.subr.mxu0 0.0
        %2080 = vmatpush1.msra.mxu0 0.0
        %2081 = vmatprep.subr.mxu0 0.0
        %2082 = vmatpush1.msra.mxu0 0.0
        %2083 = vmatprep.subr.mxu0 0.0
        %2084 = vmatpush1.msra.mxu0 0.0
        %2085 = vmatprep.subr.mxu0 0.0
        %2086 = vmatpush1.msra.mxu0 0.0
        %2087 = vmatprep.subr.mxu0 0.0
        %2088 = vmatpush1.msra.mxu0 0.0
        %2089 = vmatprep.subr.mxu0 0.0
        %2090 = vmatpush1.msra.mxu0 0.0
        %2091 = vmatprep.subr.mxu0 0.0
        %2092 = vmatpush1.msra.mxu0 0.0
        %2093 = vmatprep.subr.mxu0 0.0
        %2094 = vmatpush1.msra.mxu0 0.0
        %2095 = vmatprep.subr.mxu0 0.0
        %2096 = vmatpush1.msra.mxu0 0.0
        %2097 = vmatprep.subr.mxu0 0.0
        %2098 = vmatpush1.msra.mxu0 0.0
        %2099 = vmatprep.subr.mxu0 0.0
        %2100 = vmatpush1.msra.mxu0 0.0
        %2101 = vmatprep.subr.mxu0 0.0
        %2102 = vmatpush1.msra.mxu0 0.0
        %2103 = vmatprep.subr.mxu0 0.0
        %2104 = vmatpush1.msra.mxu0 0.0
        %2105 = vmatprep.subr.mxu0 0.0
        %2106 = vmatpush1.msra.mxu0 0.0
        %2107 = vmatprep.subr.mxu0 0.0
        %2108 = vmatpush1.msra.mxu0 0.0
        %2109 = vmatprep.subr.mxu0 0.0
        %2110 = vmatpush1.msra.mxu0 0.0
        %2111 = vmatprep.subr.mxu0 0.0
        %2112 = vmatpush1.msra.mxu0 0.0
        %2113 = vmatprep.subr.mxu0 0.0
        %2114 = vmatpush1.msra.mxu0 0.0
        %2115 = vmatprep.subr.mxu0 0.0
        %2116 = vmatpush1.msra.mxu0 0.0
        %2117 = vmatprep.subr.mxu0 0.0
        %2118 = vmatpush1.msra.mxu0 0.0
        %2119 = vmatprep.subr.mxu0 0.0
        %2120 = vmatpush1.msra.mxu0 0.0
        %2121 = vmatprep.subr.mxu0 0.0
        %2122 = vmatpush1.msra.mxu0 0.0
        %2123 = vmatprep.subr.mxu0 0.0
        %2124 = vmatpush1.msra.mxu0 0.0
        %2125 = vmatprep.subr.mxu0 0.0
        %2126 = vmatpush1.msra.mxu0 0.0
        %2127 = vmatprep.subr.mxu0 0.0
        %2128 = vmatpush1.msra.mxu0 0.0
        %2129 = vmatprep.subr.mxu0 0.0
        %2130 = vmatpush1.msra.mxu0 0.0
        %2131 = vmatprep.subr.mxu0 0.0
        %2132 = vmatpush1.msra.mxu0 0.0
        %2133 = vmatprep.mubr.f32.mxu0 0.0
        %2134 = vmatmul.mubr.f32.gmra.mrb[0].mxu0 %v2067
        %v2135 = vpop.f32.mrb[0].mxu0
        %v2136 = vadd.f32 %v2064, %v2135
        %v2137 = vpop.f32.mrb[0].mxu0
        %2138 = vdwg.mxu0
        %v2139 = vmul.f32 %v2136, 0.5
        %v2140 = vmul.f32 %v2136, 0.70710677
        %vm2141 = vcmp.ge.f32.partialorder %v2140, 0.0
        %v2142 = vsel %vm2141, 1.0, -1.0
        %v2143 = vand.u32 2147483647, %v2140
        %v2144 = vmul.f32 %v2143, 0.3275911
        %v2145 = vadd.f32 %v2144, 1.0
        %v2146 = vrcp.pop %v2145
        %v2147 = vmul.f32 1.0, %v2146
        %v2148 = vmul.f32 %v2147, 1.0614054
        %v2149 = vadd.f32 %v2148, -1.4531521
        %v2150 = vmul.f32 %v2149, %v2147
        %v2151 = vadd.f32 %v2150, 1.4214138
        %v2152 = vmul.f32 %v2151, %v2147
        %v2153 = vadd.f32 %v2152, -0.28449672
        %v2154 = vmul.f32 %v2153, %v2147
        %v2155 = vadd.f32 %v2154, 0.2548296
        %v2156 = vmul.f32 %v2155, %v2147
        %v2157 = vsub.f32 0.0, %v2143
        %v2158 = vmul.f32 %v2157, %v2143
        %v2159 = vmul.f32 %v2158, 1.442695
        %v2160 = vpow.pop %v2159
        %v2161 = vmul.f32 %v2156, %v2160
        %v2162 = vsub.f32 1.0, %v2161
        %v2163 = vmul.f32 %v2142, %v2162
        %v2164 = vadd.f32 %v2163, 1.0
        %v2165 = vmul.f32 %v2139, %v2164
        %v2166 = vld [vmem:[#allocation19] sm:$0xff]
        %v2167 = vld [vmem:[#allocation19 + $0x8] sm:$0xff]
        %v2168 = vld [vmem:[#allocation19 + $0x10] sm:$0xff]
        %v2169 = vld [vmem:[#allocation19 + $0x18] sm:$0xff]
        %v2170 = vld [vmem:[#allocation19 + $0x20] sm:$0xff]
        %v2171 = vld [vmem:[#allocation19 + $0x28] sm:$0xff]
        %v2172 = vld [vmem:[#allocation19 + $0x30] sm:$0xff]
        %v2173 = vld [vmem:[#allocation19 + $0x38] sm:$0xff]
        %v2174 = vld [vmem:[#allocation20] sm:$0x1]
        %v2176 = vlaneseq
        %v2177 = vshrl.u32 %v2176, 7
        %v2178 = vsub.s32 0, %v2177
        %v2179 = vrot.slane %v2174, %v2178
        %v2182 = vsel %vm1949, %v2165, 0
        %2184 = vmatprep.subr.mxu0 0.0
        %2185 = vmatpush1.msra.mxu0 %v2166
        %2186 = vmatprep.subr.mxu0 0.0
        %2187 = vmatpush1.msra.mxu0 %v2167
        %2188 = vmatprep.subr.mxu0 0.0
        %2189 = vmatpush1.msra.mxu0 %v2168
        %2190 = vmatprep.subr.mxu0 0.0
        %2191 = vmatpush1.msra.mxu0 %v2169
        %2192 = vmatprep.subr.mxu0 0.0
        %2193 = vmatpush1.msra.mxu0 %v2170
        %2194 = vmatprep.subr.mxu0 0.0
        %2195 = vmatpush1.msra.mxu0 %v2171
        %2196 = vmatprep.subr.mxu0 0.0
        %2197 = vmatpush1.msra.mxu0 %v2172
        %2198 = vmatprep.subr.mxu0 0.0
        %2199 = vmatpush1.msra.mxu0 %v2173
        %2200 = vmatprep.subr.mxu0 0.0
        %2201 = vmatpush1.msra.mxu0 0.0
        %2202 = vmatprep.subr.mxu0 0.0
        %2203 = vmatpush1.msra.mxu0 0.0
        %2204 = vmatprep.subr.mxu0 0.0
        %2205 = vmatpush1.msra.mxu0 0.0
        %2206 = vmatprep.subr.mxu0 0.0
        %2207 = vmatpush1.msra.mxu0 0.0
        %2208 = vmatprep.subr.mxu0 0.0
        %2209 = vmatpush1.msra.mxu0 0.0
        %2210 = vmatprep.subr.mxu0 0.0
        %2211 = vmatpush1.msra.mxu0 0.0
        %2212 = vmatprep.subr.mxu0 0.0
        %2213 = vmatpush1.msra.mxu0 0.0
        %2214 = vmatprep.subr.mxu0 0.0
        %2215 = vmatpush1.msra.mxu0 0.0
        %2216 = vmatprep.subr.mxu0 0.0
        %2217 = vmatpush1.msra.mxu0 0.0
        %2218 = vmatprep.subr.mxu0 0.0
        %2219 = vmatpush1.msra.mxu0 0.0
        %2220 = vmatprep.subr.mxu0 0.0
        %2221 = vmatpush1.msra.mxu0 0.0
        %2222 = vmatprep.subr.mxu0 0.0
        %2223 = vmatpush1.msra.mxu0 0.0
        %2224 = vmatprep.subr.mxu0 0.0
        %2225 = vmatpush1.msra.mxu0 0.0
        %2226 = vmatprep.subr.mxu0 0.0
        %2227 = vmatpush1.msra.mxu0 0.0
        %2228 = vmatprep.subr.mxu0 0.0
        %2229 = vmatpush1.msra.mxu0 0.0
        %2230 = vmatprep.subr.mxu0 0.0
        %2231 = vmatpush1.msra.mxu0 0.0
        %2232 = vmatprep.subr.mxu0 0.0
        %2233 = vmatpush1.msra.mxu0 0.0
        %2234 = vmatprep.subr.mxu0 0.0
        %2235 = vmatpush1.msra.mxu0 0.0
        %2236 = vmatprep.subr.mxu0 0.0
        %2237 = vmatpush1.msra.mxu0 0.0
        %2238 = vmatprep.subr.mxu0 0.0
        %2239 = vmatpush1.msra.mxu0 0.0
        %2240 = vmatprep.subr.mxu0 0.0
        %2241 = vmatpush1.msra.mxu0 0.0
        %2242 = vmatprep.subr.mxu0 0.0
        %2243 = vmatpush1.msra.mxu0 0.0
        %2244 = vmatprep.subr.mxu0 0.0
        %2245 = vmatpush1.msra.mxu0 0.0
        %2246 = vmatprep.subr.mxu0 0.0
        %2247 = vmatpush1.msra.mxu0 0.0
        %2248 = vmatprep.mubr.f32.mxu0 0.0
        %2249 = vmatmul.mubr.f32.gmra.mrb[0].mxu0 %v2182
        %v2250 = vpop.f32.mrb[0].mxu0
        %v2251 = vadd.f32 %v2179, %v2250
        %v2252 = vpop.f32.mrb[0].mxu0
        %2253 = vdwg.mxu0
        %2254 = vst.msk [vmem:[%s574] sm:$0xff] %vm578, %v2251
        %s2255 = sand.u32 %s300, 1
        %s2256 = scalar_lea.sflag [#allocation4], %s2255
        %s2257 = sand.u32 %s300, 1
        %s2258 = smul.addr %s2257, 8
        %s2259 = scalar_lea.vmem [#allocation22], %s2258
        // Predicated region
        $region117: #{tpu_custom_call.1} parent=67 // pred_check
          %p2260 = pneg %p310
        $region118: #{tpu_custom_call.1} parent=67 // pred_check_branch
          %2262 = sbr.rel (%p2260) target = $region120
        $region119: #{tpu_custom_call.1} parent=67 // pred_region
          %s2264 = ssub.s32 128, 128
          %2265 = vsyncadd %s2256, %s2264
          %s2266 = smul.addr %s35, 128
          %s2267 = scalar_lea.hbm %s12, %s2266
          %s2269 = sshll.u32 %s2259, 4
          %s2270 = int_to_ptr.vmem [resolvable:$true] %s2269
          %2272 = dma.vmem_to_hbm [thread:$0]  %s2270, 128, %s2267, %s2256
        $region120: #{tpu_custom_call.1} parent=67 // pred_fallthru
          _
      $region68: #{tpu_custom_call.1} parent=5 // pred_fallthru
        _
      %p2273 = scmp.le.s32.totalorder 2, %s30
      // Predicated region
      $region121: #{tpu_custom_call.1} parent=5 // pred_check
        %p2274 = pneg %p2273
      $region122: #{tpu_custom_call.1} parent=5 // pred_check_branch
        %2276 = sbr.rel (%p2274) target = $region124
      $region123: #{tpu_custom_call.1} parent=5 // pred_region
        %s2277 = ssub.s32 %s30, 2
        // Predicated region
        $region125: #{tpu_custom_call.1} parent=123 // pred_check
          %p2278 = pneg %p316
        $region126: #{tpu_custom_call.1} parent=123 // pred_check_branch
          %2280 = sbr.rel (%p2278) target = $region128
        $region127: #{tpu_custom_call.1} parent=123 // pred_region
          %s2281 = sand.u32 %s301, 1
          %s2282 = scalar_lea.sflag [#allocation4], %s2281
          %s2283 = sand.u32 %s301, 1
          %s2284 = smul.addr %s2283, 8
          %s2285 = scalar_lea.vmem [#allocation22], %s2284
          %2286 = dma.done %s2282, 128
        $region128: #{tpu_custom_call.1} parent=123 // pred_fallthru
          _
      $region124: #{tpu_custom_call.1} parent=5 // pred_fallthru
        _
    $region6: #{tpu_custom_call.1} parent=1 // loop_footer
      %s34 = sadd.s32 1, %s30
    $region7: #{tpu_custom_call.1} parent=1 // loop_footer_branch
      %29 = sbr.rel target = $region3
    $region8: #{tpu_custom_call.1} parent=1 // loop_exit
      _
    %2287 = vsyncpa [#allocation3], 1
    %s2288 = scalar_lea.sflag [#allocation3], 1
    %2289 = vsyncpa %s2288, 1
    %2290 = vsyncpa [#allocation6], 1
    %2291 = vsyncpa [#allocation9], 1
    %2292 = vsyncpa [#allocation12], 1
    %2293 = vsyncpa [#allocation15], 1
    %2294 = vsyncpa [#allocation18], 1
    %2295 = vsyncpa [#allocation21], 1
    %2296 = vsyncpa [#allocation4], 1
    %s2297 = scalar_lea.sflag [#allocation4], 1
    %2298 = vsyncpa %s2297, 1

</llo_original>
